<compile_context>
chip_gen: v6e
topology: v6e:2x2x1
jax: 0.10.0
libtpu: 0.0.40
codegen_flags: <defaults>
</compile_context>

<pallas_src>
import jax
import jax.numpy as jnp
from jax import lax
from jax.experimental import pallas as pl
from jax.experimental.pallas import tpu as pltpu

LANE = 128  # per-gate lane-block width in the recurrent weight layout


def _lstm_dense_kernel(x_ref, wih_ref, b_ref, whh_ref, w1_ref, b1_ref,
                       w2_ref, b2_ref, out_ref):
    T, H, n_pad = w1_ref.shape          # (T, H, 512)
    B = out_ref.shape[0]

    # 1) Input projection for ALL timesteps: one K=512 bf16 MXU matmul
    #    (f32 accumulation) with the combined gate bias folded in.
    #    Gate order is PyTorch's [i, f, g, o]; columns stay compact (4H) so
    #    the wih DMA stays small — the per-gate slices below are independent
    #    of h and therefore off the serial critical chain.
    xg = jnp.dot(x_ref[...], wih_ref[...],
                 preferred_element_type=jnp.float32) + b_ref[...]   # (T*B, 4H)

    # Recurrent weights, gate-aligned: (H, 4*128) bf16, gate k in lanes
    # [128k, 128k+H), zeros elsewhere -> post-matmul gate slices are
    # vreg-aligned (no XLU lane rotates on the h -> c -> h chain).
    whh = whh_ref[...]

    c = jnp.zeros((B, H), jnp.float32)
    d1 = jnp.zeros((B, n_pad), jnp.float32)      # dense1 accumulator (review #1)
    h_bf = None

    # 2) Serial LSTM recurrence, fully unrolled (T small & static).  Only
    #    matmul(h) -> +xg -> sigmoid/tanh -> c/h update is serial; the xg
    #    slicing and the dense1 fold are h-independent filler for the
    #    scheduler.
    for t in range(T):
        xg_t = xg[t * B:(t + 1) * B, :]                       # static row slice

        if t == 0:
            # h0 == 0 -> recurrent term is exactly zero; skip the matmul.
            def gate(k, xg_t=xg_t):
                return xg_t[:, k * H:(k + 1) * H]
        else:
            rec = jnp.dot(h_bf, whh,
                          preferred_element_type=jnp.float32)  # (B, 4*128) f32

            def gate(k, xg_t=xg_t, rec=rec):
                # xg slice: compact, off-chain.  rec slice: lane offset 128k
                # == vreg boundary -> free sub-view.
                return (xg_t[:, k * H:(k + 1) * H]
                        + rec[:, k * LANE:k * LANE + H])

        i_g = jax.nn.sigmoid(gate(0))
        f_g = jax.nn.sigmoid(gate(1))
        g_g = jnp.tanh(gate(2))
        o_g = jax.nn.sigmoid(gate(3))

        c = f_g * c + i_g * g_g            # f32 elementwise (v5e-friendly)
        h = o_g * jnp.tanh(c)
        h_bf = h.astype(jnp.bfloat16)      # single cast, reused by both dots

        # 3) dense1 folded into the recurrence: d1 += h_t @ w1[t]
        #    (independent of the h->h chain -> overlapped by the scheduler).
        d1 = d1 + jnp.dot(h_bf, w1_ref[t],
                          preferred_element_type=jnp.float32)

    # 4) Epilogue: bias + ReLU (Dropout == identity at inference) + dense2.
    d1 = jnp.maximum(d1 + b1_ref[...], 0.0)
    out_ref[...] = (jnp.dot(d1.astype(jnp.bfloat16), w2_ref[...],
                            preferred_element_type=jnp.float32) + b2_ref[...])


def prepare_params(params):
    """One-time weight preprocessing, hoisted out of the forward path
    (review #10).  Call once at model load; the forward only touches x."""
    wih_t, whh_t, b_gates, w1_t, b1, w2_t, b2 = params
    H = whh_t.shape[0]
    assert H <= LANE
    T = w1_t.shape[0] // H
    N = w1_t.shape[1]
    N_pad = ((N + LANE - 1) // LANE) * LANE       # 500 -> 512, lane-dense

    # Recurrent weights: place gate k's H columns at lane offset 128*k
    # (gate order stays PyTorch's [i, f, g, o]).
    gate_blocks = [jnp.pad(g, ((0, 0), (0, LANE - H)))
                   for g in jnp.split(whh_t, 4, axis=1)]
    whh_pad = jnp.concatenate(gate_blocks, axis=1).astype(jnp.bfloat16)  # (H, 512)

    wih_bf = wih_t.astype(jnp.bfloat16)                       # (512, 4H), compact

    # dense1 reshaped per-timestep so it can be folded into the recurrence,
    # zero-padded 500 -> 512 (padding cols are 0 after ReLU, and the matching
    # zero rows of w2 keep the output unchanged), bf16 to halve the dominant
    # weight DMA (review #5).
    w1_bf = (jnp.pad(w1_t, ((0, 0), (0, N_pad - N)))
             .reshape(T, H, N_pad).astype(jnp.bfloat16))
    b1_pad = jnp.pad(b1, ((0, 0), (0, N_pad - N)))
    w2_bf = jnp.pad(w2_t, ((0, N_pad - N), (0, 0))).astype(jnp.bfloat16)

    return (wih_bf, b_gates, whh_pad, w1_bf, b1_pad, w2_bf, b2)


def simple_lstm_audio_forward(x, prepared):
    """x: (B, T, 512) float32 (batch-first, as the PyTorch LSTM sees it)."""
    wih_bf, b_gates, whh_pad, w1_bf, b1_pad, w2_bf, b2 = prepared
    B, T, D = x.shape
    E = w2_bf.shape[1]

    # Per-call input prep: time-major, flattened, bf16 for the K=512 projection
    # (MXU accumulates in f32; all recurrent elementwise math stays f32).
    x_tb = jnp.swapaxes(x, 0, 1).reshape(T * B, D).astype(jnp.bfloat16)

    vmem = pl.BlockSpec(memory_space=pltpu.MemorySpace.VMEM)

    # TODO(synk): for non-toy batch sizes, add a grid over batch blocks
    #   (BlockSpec index_map over x/out rows) with
    #   compiler_params=pltpu.CompilerParams(dimension_semantics=("parallel",))
    #   so both v7x TensorCores are used; size the batch block for v7x's
    #   64 MiB VMEM (set vmem_limit_bytes explicitly), keep T*bb a multiple of
    #   256 rows (128 on v5e) to fill the MXU, and pad the E=8 output to 128
    #   lanes per grid step.
    return pl.pallas_call(
        _lstm_dense_kernel,
        out_shape=jax.ShapeDtypeStruct((B, E), jnp.float32),
        in_specs=[vmem] * 8,                 # 8 inputs -> 8 specs
        out_specs=vmem,
    )(x_tb, wih_bf, b_gates, whh_pad, w1_bf, b1_pad, w2_bf, b2)


# ---------------------------------------------------------------------------
# Pure-JAX reference (mirrors the PyTorch forward) for correctness checking.
# ---------------------------------------------------------------------------
def reference_forward(x, params):
    wih_t, whh_t, b_gates, w1_t, b1, w2_t, b2 = params
    B, T, D = x.shape
    H = whh_t.shape[0]

    def cell(carry, x_t):
        h, c = carry
        g = x_t @ wih_t + h @ whh_t + b_gates[0]
        i = jax.nn.sigmoid(g[:, 0 * H:1 * H])
        f = jax.nn.sigmoid(g[:, 1 * H:2 * H])
        gg = jnp.tanh(g[:, 2 * H:3 * H])
        o = jax.nn.sigmoid(g[:, 3 * H:4 * H])
        c = f * c + i * gg
        h = o * jnp.tanh(c)
        return (h, c), h

    (_, _), hs = lax.scan(cell, (jnp.zeros((B, H)), jnp.zeros((B, H))),
                          jnp.swapaxes(x, 0, 1))
    flat = jnp.swapaxes(hs, 0, 1).reshape(B, T * H)
    d1 = jnp.maximum(flat @ w1_t + b1[0], 0.0)
    return d1 @ w2_t + b2[0]


if __name__ == "__main__":
    # Small, forward-consistent shapes (audio_size must be 512 because the
    # PyTorch forward hard-codes x.view(B, num_frames, 512)).
    B, T, D, H, E = 2, 8, 512, 16, 8   # batch, num_frames, audio_size, hidden, n_emotions

    key = jax.random.PRNGKey(0)
    ks = jax.random.split(key, 8)
    s_lstm = 1.0 / jnp.sqrt(H)
    s_d1 = 1.0 / jnp.sqrt(T * H)
    s_d2 = 1.0 / jnp.sqrt(500)

    x = jax.random.normal(ks[0], (B, T, D), jnp.float32)

    # LSTM params (PyTorch gate order i, f, g, o), pre-transposed to (in, out).
    wih_t = jax.random.uniform(ks[1], (D, 4 * H), jnp.float32, -s_lstm, s_lstm)
    whh_t = jax.random.uniform(ks[2], (H, 4 * H), jnp.float32, -s_lstm, s_lstm)
    b_gates = jax.random.uniform(ks[3], (1, 4 * H), jnp.float32, -s_lstm, s_lstm)  # b_ih + b_hh
    # dense1: Linear(T*H, 500)
    w1_t = jax.random.uniform(ks[4], (T * H, 500), jnp.float32, -s_d1, s_d1)
    b1 = jax.random.uniform(ks[5], (1, 500), jnp.float32, -s_d1, s_d1)
    # dense2: Linear(500, E)
    w2_t = jax.random.uniform(ks[6], (500, E), jnp.float32, -s_d2, s_d2)
    b2 = jax.random.uniform(ks[7], (1, E), jnp.float32, -s_d2, s_d2)

    params = (wih_t, whh_t, b_gates, w1_t, b1, w2_t, b2)

    # Weight preprocessing runs exactly once (model-load time), not per call.
    prepared = jax.tree.map(jax.block_until_ready, prepare_params(params))

    out = simple_lstm_audio_forward(x, prepared)
    out = jax.block_until_ready(out)

    ref = reference_forward(x, params)
    assert out.shape == (B, E)
    # Tolerance relaxed vs. 1e-4 because all matmuls run with bf16 operands
    # (f32 accumulation) inside the kernel.
    assert jnp.allclose(out, ref, atol=5e-2, rtol=5e-2), (
        f"max abs err {jnp.max(jnp.abs(out - ref))}")

    print("KERNEL_OK")
</pallas_src>

<mosaic_0001>
module attributes {stable_mosaic.version = 11 : i64} {
  func.func @_lstm_dense_kernel(%arg0: memref<16x512xbf16, #tpu.memory_space<vmem>>, %arg1: memref<512x64xbf16, #tpu.memory_space<vmem>>, %arg2: memref<1x64xf32, #tpu.memory_space<vmem>>, %arg3: memref<16x512xbf16, #tpu.memory_space<vmem>>, %arg4: memref<8x16x512xbf16, #tpu.memory_space<vmem>>, %arg5: memref<1x512xf32, #tpu.memory_space<vmem>>, %arg6: memref<512x8xbf16, #tpu.memory_space<vmem>>, %arg7: memref<1x8xf32, #tpu.memory_space<vmem>>, %arg8: memref<2x8xf32, #tpu.memory_space<vmem>>) attributes {dimension_semantics = [], scalar_prefetch = 0 : i64, scratch_operands = 0 : i64, tpu.core_type = #tpu.core_type<tc>} {
    %c0 = arith.constant 0 : index
    %c0_0 = arith.constant 0 : index
    %0 = vector.load %arg0[%c0, %c0_0] : memref<16x512xbf16, #tpu.memory_space<vmem>>, vector<16x512xbf16>
    %c0_1 = arith.constant 0 : index
    %c0_2 = arith.constant 0 : index
    %1 = vector.load %arg1[%c0_1, %c0_2] : memref<512x64xbf16, #tpu.memory_space<vmem>>, vector<512x64xbf16>
    %cst = arith.constant dense<0.000000e+00> : vector<16x64xf32>
    %2 = tpu.matmul %0, %1, %cst {dimension_numbers = #tpu.dot_dimension_numbers<[1], [0], [0], [1], [0, 0, 1, 1], [], []>} : vector<16x512xbf16>, vector<512x64xbf16>, vector<16x64xf32> -> vector<16x64xf32>
    %c0_3 = arith.constant 0 : index
    %c0_4 = arith.constant 0 : index
    %3 = vector.load %arg2[%c0_3, %c0_4] : memref<1x64xf32, #tpu.memory_space<vmem>>, vector<1x64xf32>
    %4 = vector.broadcast %3 : vector<1x64xf32> to vector<16x64xf32>
    %5 = arith.addf %2, %4 : vector<16x64xf32>
    %c0_5 = arith.constant 0 : index
    %c0_6 = arith.constant 0 : index
    %6 = vector.load %arg3[%c0_5, %c0_6] : memref<16x512xbf16, #tpu.memory_space<vmem>>, vector<16x512xbf16>
    %cst_7 = arith.constant 0.000000e+00 : f32
    %7 = vector.broadcast %cst_7 : f32 to vector<2x16xf32>
    %cst_8 = arith.constant 0.000000e+00 : f32
    %8 = vector.broadcast %cst_8 : f32 to vector<2x512xf32>
    %9 = vector.extract_strided_slice %5 {offsets = [0, 0], sizes = [2, 64], strides = [1, 1]} : vector<16x64xf32> to vector<2x64xf32>
    %10 = vector.extract_strided_slice %9 {offsets = [0, 0], sizes = [2, 16], strides = [1, 1]} : vector<2x64xf32> to vector<2x16xf32>
    %11 = arith.negf %10 : vector<2x16xf32>
    %12 = math.exp %11 : vector<2x16xf32>
    %cst_9 = arith.constant 1.000000e+00 : f32
    %13 = vector.broadcast %cst_9 : f32 to vector<2x16xf32>
    %14 = arith.addf %13, %12 : vector<2x16xf32>
    %15 = arith.divf %13, %14 : vector<2x16xf32>
    %16 = vector.extract_strided_slice %9 {offsets = [0, 16], sizes = [2, 16], strides = [1, 1]} : vector<2x64xf32> to vector<2x16xf32>
    %17 = arith.negf %16 : vector<2x16xf32>
    %18 = math.exp %17 : vector<2x16xf32>
    %cst_10 = arith.constant 1.000000e+00 : f32
    %19 = vector.broadcast %cst_10 : f32 to vector<2x16xf32>
    %20 = arith.addf %19, %18 : vector<2x16xf32>
    %21 = arith.divf %19, %20 : vector<2x16xf32>
    %22 = vector.extract_strided_slice %9 {offsets = [0, 32], sizes = [2, 16], strides = [1, 1]} : vector<2x64xf32> to vector<2x16xf32>
    %23 = math.tanh %22 : vector<2x16xf32>
    %24 = vector.extract_strided_slice %9 {offsets = [0, 48], sizes = [2, 16], strides = [1, 1]} : vector<2x64xf32> to vector<2x16xf32>
    %25 = arith.negf %24 : vector<2x16xf32>
    %26 = math.exp %25 : vector<2x16xf32>
    %cst_11 = arith.constant 1.000000e+00 : f32
    %27 = vector.broadcast %cst_11 : f32 to vector<2x16xf32>
    %28 = arith.addf %27, %26 : vector<2x16xf32>
    %29 = arith.divf %27, %28 : vector<2x16xf32>
    %30 = arith.mulf %21, %7 : vector<2x16xf32>
    %31 = arith.mulf %15, %23 : vector<2x16xf32>
    %32 = arith.addf %30, %31 : vector<2x16xf32>
    %33 = math.tanh %32 : vector<2x16xf32>
    %34 = arith.mulf %29, %33 : vector<2x16xf32>
    %35 = arith.truncf %34 : vector<2x16xf32> to vector<2x16xbf16>
    %c0_12 = arith.constant 0 : index
    %c0_13 = arith.constant 0 : index
    %c0_14 = arith.constant 0 : index
    %36 = vector.load %arg4[%c0_12, %c0_13, %c0_14] : memref<8x16x512xbf16, #tpu.memory_space<vmem>>, vector<1x16x512xbf16>
    %37 = vector.shape_cast %36 : vector<1x16x512xbf16> to vector<16x512xbf16>
    %cst_15 = arith.constant dense<0.000000e+00> : vector<2x512xf32>
    %38 = tpu.matmul %35, %37, %cst_15 {dimension_numbers = #tpu.dot_dimension_numbers<[1], [0], [0], [1], [0, 0, 1, 1], [], []>} : vector<2x16xbf16>, vector<16x512xbf16>, vector<2x512xf32> -> vector<2x512xf32>
    %39 = arith.addf %8, %38 : vector<2x512xf32>
    %40 = vector.extract_strided_slice %5 {offsets = [2, 0], sizes = [2, 64], strides = [1, 1]} : vector<16x64xf32> to vector<2x64xf32>
    %cst_16 = arith.constant dense<0.000000e+00> : vector<2x512xf32>
    %41 = tpu.matmul %35, %6, %cst_16 {dimension_numbers = #tpu.dot_dimension_numbers<[1], [0], [0], [1], [0, 0, 1, 1], [], []>} : vector<2x16xbf16>, vector<16x512xbf16>, vector<2x512xf32> -> vector<2x512xf32>
    %42 = vector.extract_strided_slice %40 {offsets = [0, 0], sizes = [2, 16], strides = [1, 1]} : vector<2x64xf32> to vector<2x16xf32>
    %43 = vector.extract_strided_slice %41 {offsets = [0, 0], sizes = [2, 16], strides = [1, 1]} : vector<2x512xf32> to vector<2x16xf32>
    %44 = arith.addf %42, %43 : vector<2x16xf32>
    %45 = arith.negf %44 : vector<2x16xf32>
    %46 = math.exp %45 : vector<2x16xf32>
    %cst_17 = arith.constant 1.000000e+00 : f32
    %47 = vector.broadcast %cst_17 : f32 to vector<2x16xf32>
    %48 = arith.addf %47, %46 : vector<2x16xf32>
    %49 = arith.divf %47, %48 : vector<2x16xf32>
    %50 = vector.extract_strided_slice %40 {offsets = [0, 16], sizes = [2, 16], strides = [1, 1]} : vector<2x64xf32> to vector<2x16xf32>
    %51 = vector.extract_strided_slice %41 {offsets = [0, 128], sizes = [2, 16], strides = [1, 1]} : vector<2x512xf32> to vector<2x16xf32>
    %52 = arith.addf %50, %51 : vector<2x16xf32>
    %53 = arith.negf %52 : vector<2x16xf32>
    %54 = math.exp %53 : vector<2x16xf32>
    %cst_18 = arith.constant 1.000000e+00 : f32
    %55 = vector.broadcast %cst_18 : f32 to vector<2x16xf32>
    %56 = arith.addf %55, %54 : vector<2x16xf32>
    %57 = arith.divf %55, %56 : vector<2x16xf32>
    %58 = vector.extract_strided_slice %40 {offsets = [0, 32], sizes = [2, 16], strides = [1, 1]} : vector<2x64xf32> to vector<2x16xf32>
    %59 = vector.extract_strided_slice %41 {offsets = [0, 256], sizes = [2, 16], strides = [1, 1]} : vector<2x512xf32> to vector<2x16xf32>
    %60 = arith.addf %58, %59 : vector<2x16xf32>
    %61 = math.tanh %60 : vector<2x16xf32>
    %62 = vector.extract_strided_slice %40 {offsets = [0, 48], sizes = [2, 16], strides = [1, 1]} : vector<2x64xf32> to vector<2x16xf32>
    %63 = vector.extract_strided_slice %41 {offsets = [0, 384], sizes = [2, 16], strides = [1, 1]} : vector<2x512xf32> to vector<2x16xf32>
    %64 = arith.addf %62, %63 : vector<2x16xf32>
    %65 = arith.negf %64 : vector<2x16xf32>
    %66 = math.exp %65 : vector<2x16xf32>
    %cst_19 = arith.constant 1.000000e+00 : f32
    %67 = vector.broadcast %cst_19 : f32 to vector<2x16xf32>
    %68 = arith.addf %67, %66 : vector<2x16xf32>
    %69 = arith.divf %67, %68 : vector<2x16xf32>
    %70 = arith.mulf %57, %32 : vector<2x16xf32>
    %71 = arith.mulf %49, %61 : vector<2x16xf32>
    %72 = arith.addf %70, %71 : vector<2x16xf32>
    %73 = math.tanh %72 : vector<2x16xf32>
    %74 = arith.mulf %69, %73 : vector<2x16xf32>
    %75 = arith.truncf %74 : vector<2x16xf32> to vector<2x16xbf16>
    %c1 = arith.constant 1 : index
    %c0_20 = arith.constant 0 : index
    %c0_21 = arith.constant 0 : index
    %76 = vector.load %arg4[%c1, %c0_20, %c0_21] : memref<8x16x512xbf16, #tpu.memory_space<vmem>>, vector<1x16x512xbf16>
    %77 = vector.shape_cast %76 : vector<1x16x512xbf16> to vector<16x512xbf16>
    %cst_22 = arith.constant dense<0.000000e+00> : vector<2x512xf32>
    %78 = tpu.matmul %75, %77, %cst_22 {dimension_numbers = #tpu.dot_dimension_numbers<[1], [0], [0], [1], [0, 0, 1, 1], [], []>} : vector<2x16xbf16>, vector<16x512xbf16>, vector<2x512xf32> -> vector<2x512xf32>
    %79 = arith.addf %39, %78 : vector<2x512xf32>
    %80 = vector.extract_strided_slice %5 {offsets = [4, 0], sizes = [2, 64], strides = [1, 1]} : vector<16x64xf32> to vector<2x64xf32>
    %cst_23 = arith.constant dense<0.000000e+00> : vector<2x512xf32>
    %81 = tpu.matmul %75, %6, %cst_23 {dimension_numbers = #tpu.dot_dimension_numbers<[1], [0], [0], [1], [0, 0, 1, 1], [], []>} : vector<2x16xbf16>, vector<16x512xbf16>, vector<2x512xf32> -> vector<2x512xf32>
    %82 = vector.extract_strided_slice %80 {offsets = [0, 0], sizes = [2, 16], strides = [1, 1]} : vector<2x64xf32> to vector<2x16xf32>
    %83 = vector.extract_strided_slice %81 {offsets = [0, 0], sizes = [2, 16], strides = [1, 1]} : vector<2x512xf32> to vector<2x16xf32>
    %84 = arith.addf %82, %83 : vector<2x16xf32>
    %85 = arith.negf %84 : vector<2x16xf32>
    %86 = math.exp %85 : vector<2x16xf32>
    %cst_24 = arith.constant 1.000000e+00 : f32
    %87 = vector.broadcast %cst_24 : f32 to vector<2x16xf32>
    %88 = arith.addf %87, %86 : vector<2x16xf32>
    %89 = arith.divf %87, %88 : vector<2x16xf32>
    %90 = vector.extract_strided_slice %80 {offsets = [0, 16], sizes = [2, 16], strides = [1, 1]} : vector<2x64xf32> to vector<2x16xf32>
    %91 = vector.extract_strided_slice %81 {offsets = [0, 128], sizes = [2, 16], strides = [1, 1]} : vector<2x512xf32> to vector<2x16xf32>
    %92 = arith.addf %90, %91 : vector<2x16xf32>
    %93 = arith.negf %92 : vector<2x16xf32>
    %94 = math.exp %93 : vector<2x16xf32>
    %cst_25 = arith.constant 1.000000e+00 : f32
    %95 = vector.broadcast %cst_25 : f32 to vector<2x16xf32>
    %96 = arith.addf %95, %94 : vector<2x16xf32>
    %97 = arith.divf %95, %96 : vector<2x16xf32>
    %98 = vector.extract_strided_slice %80 {offsets = [0, 32], sizes = [2, 16], strides = [1, 1]} : vector<2x64xf32> to vector<2x16xf32>
    %99 = vector.extract_strided_slice %81 {offsets = [0, 256], sizes = [2, 16], strides = [1, 1]} : vector<2x512xf32> to vector<2x16xf32>
    %100 = arith.addf %98, %99 : vector<2x16xf32>
    %101 = math.tanh %100 : vector<2x16xf32>
    %102 = vector.extract_strided_slice %80 {offsets = [0, 48], sizes = [2, 16], strides = [1, 1]} : vector<2x64xf32> to vector<2x16xf32>
    %103 = vector.extract_strided_slice %81 {offsets = [0, 384], sizes = [2, 16], strides = [1, 1]} : vector<2x512xf32> to vector<2x16xf32>
    %104 = arith.addf %102, %103 : vector<2x16xf32>
    %105 = arith.negf %104 : vector<2x16xf32>
    %106 = math.exp %105 : vector<2x16xf32>
    %cst_26 = arith.constant 1.000000e+00 : f32
    %107 = vector.broadcast %cst_26 : f32 to vector<2x16xf32>
    %108 = arith.addf %107, %106 : vector<2x16xf32>
    %109 = arith.divf %107, %108 : vector<2x16xf32>
    %110 = arith.mulf %97, %72 : vector<2x16xf32>
    %111 = arith.mulf %89, %101 : vector<2x16xf32>
    %112 = arith.addf %110, %111 : vector<2x16xf32>
    %113 = math.tanh %112 : vector<2x16xf32>
    %114 = arith.mulf %109, %113 : vector<2x16xf32>
    %115 = arith.truncf %114 : vector<2x16xf32> to vector<2x16xbf16>
    %c2 = arith.constant 2 : index
    %c0_27 = arith.constant 0 : index
    %c0_28 = arith.constant 0 : index
    %116 = vector.load %arg4[%c2, %c0_27, %c0_28] : memref<8x16x512xbf16, #tpu.memory_space<vmem>>, vector<1x16x512xbf16>
    %117 = vector.shape_cast %116 : vector<1x16x512xbf16> to vector<16x512xbf16>
    %cst_29 = arith.constant dense<0.000000e+00> : vector<2x512xf32>
    %118 = tpu.matmul %115, %117, %cst_29 {dimension_numbers = #tpu.dot_dimension_numbers<[1], [0], [0], [1], [0, 0, 1, 1], [], []>} : vector<2x16xbf16>, vector<16x512xbf16>, vector<2x512xf32> -> vector<2x512xf32>
    %119 = arith.addf %79, %118 : vector<2x512xf32>
    %120 = vector.extract_strided_slice %5 {offsets = [6, 0], sizes = [2, 64], strides = [1, 1]} : vector<16x64xf32> to vector<2x64xf32>
    %cst_30 = arith.constant dense<0.000000e+00> : vector<2x512xf32>
    %121 = tpu.matmul %115, %6, %cst_30 {dimension_numbers = #tpu.dot_dimension_numbers<[1], [0], [0], [1], [0, 0, 1, 1], [], []>} : vector<2x16xbf16>, vector<16x512xbf16>, vector<2x512xf32> -> vector<2x512xf32>
    %122 = vector.extract_strided_slice %120 {offsets = [0, 0], sizes = [2, 16], strides = [1, 1]} : vector<2x64xf32> to vector<2x16xf32>
    %123 = vector.extract_strided_slice %121 {offsets = [0, 0], sizes = [2, 16], strides = [1, 1]} : vector<2x512xf32> to vector<2x16xf32>
    %124 = arith.addf %122, %123 : vector<2x16xf32>
    %125 = arith.negf %124 : vector<2x16xf32>
    %126 = math.exp %125 : vector<2x16xf32>
    %cst_31 = arith.constant 1.000000e+00 : f32
    %127 = vector.broadcast %cst_31 : f32 to vector<2x16xf32>
    %128 = arith.addf %127, %126 : vector<2x16xf32>
    %129 = arith.divf %127, %128 : vector<2x16xf32>
    %130 = vector.extract_strided_slice %120 {offsets = [0, 16], sizes = [2, 16], strides = [1, 1]} : vector<2x64xf32> to vector<2x16xf32>
    %131 = vector.extract_strided_slice %121 {offsets = [0, 128], sizes = [2, 16], strides = [1, 1]} : vector<2x512xf32> to vector<2x16xf32>
    %132 = arith.addf %130, %131 : vector<2x16xf32>
    %133 = arith.negf %132 : vector<2x16xf32>
    %134 = math.exp %133 : vector<2x16xf32>
    %cst_32 = arith.constant 1.000000e+00 : f32
    %135 = vector.broadcast %cst_32 : f32 to vector<2x16xf32>
    %136 = arith.addf %135, %134 : vector<2x16xf32>
    %137 = arith.divf %135, %136 : vector<2x16xf32>
    %138 = vector.extract_strided_slice %120 {offsets = [0, 32], sizes = [2, 16], strides = [1, 1]} : vector<2x64xf32> to vector<2x16xf32>
    %139 = vector.extract_strided_slice %121 {offsets = [0, 256], sizes = [2, 16], strides = [1, 1]} : vector<2x512xf32> to vector<2x16xf32>
    %140 = arith.addf %138, %139 : vector<2x16xf32>
    %141 = math.tanh %140 : vector<2x16xf32>
    %142 = vector.extract_strided_slice %120 {offsets = [0, 48], sizes = [2, 16], strides = [1, 1]} : vector<2x64xf32> to vector<2x16xf32>
    %143 = vector.extract_strided_slice %121 {offsets = [0, 384], sizes = [2, 16], strides = [1, 1]} : vector<2x512xf32> to vector<2x16xf32>
    %144 = arith.addf %142, %143 : vector<2x16xf32>
    %145 = arith.negf %144 : vector<2x16xf32>
    %146 = math.exp %145 : vector<2x16xf32>
    %cst_33 = arith.constant 1.000000e+00 : f32
    %147 = vector.broadcast %cst_33 : f32 to vector<2x16xf32>
    %148 = arith.addf %147, %146 : vector<2x16xf32>
    %149 = arith.divf %147, %148 : vector<2x16xf32>
    %150 = arith.mulf %137, %112 : vector<2x16xf32>
    %151 = arith.mulf %129, %141 : vector<2x16xf32>
    %152 = arith.addf %150, %151 : vector<2x16xf32>
    %153 = math.tanh %152 : vector<2x16xf32>
    %154 = arith.mulf %149, %153 : vector<2x16xf32>
    %155 = arith.truncf %154 : vector<2x16xf32> to vector<2x16xbf16>
    %c3 = arith.constant 3 : index
    %c0_34 = arith.constant 0 : index
    %c0_35 = arith.constant 0 : index
    %156 = vector.load %arg4[%c3, %c0_34, %c0_35] : memref<8x16x512xbf16, #tpu.memory_space<vmem>>, vector<1x16x512xbf16>
    %157 = vector.shape_cast %156 : vector<1x16x512xbf16> to vector<16x512xbf16>
    %cst_36 = arith.constant dense<0.000000e+00> : vector<2x512xf32>
    %158 = tpu.matmul %155, %157, %cst_36 {dimension_numbers = #tpu.dot_dimension_numbers<[1], [0], [0], [1], [0, 0, 1, 1], [], []>} : vector<2x16xbf16>, vector<16x512xbf16>, vector<2x512xf32> -> vector<2x512xf32>
    %159 = arith.addf %119, %158 : vector<2x512xf32>
    %160 = vector.extract_strided_slice %5 {offsets = [8, 0], sizes = [2, 64], strides = [1, 1]} : vector<16x64xf32> to vector<2x64xf32>
    %cst_37 = arith.constant dense<0.000000e+00> : vector<2x512xf32>
    %161 = tpu.matmul %155, %6, %cst_37 {dimension_numbers = #tpu.dot_dimension_numbers<[1], [0], [0], [1], [0, 0, 1, 1], [], []>} : vector<2x16xbf16>, vector<16x512xbf16>, vector<2x512xf32> -> vector<2x512xf32>
    %162 = vector.extract_strided_slice %160 {offsets = [0, 0], sizes = [2, 16], strides = [1, 1]} : vector<2x64xf32> to vector<2x16xf32>
    %163 = vector.extract_strided_slice %161 {offsets = [0, 0], sizes = [2, 16], strides = [1, 1]} : vector<2x512xf32> to vector<2x16xf32>
    %164 = arith.addf %162, %163 : vector<2x16xf32>
    %165 = arith.negf %164 : vector<2x16xf32>
    %166 = math.exp %165 : vector<2x16xf32>
    %cst_38 = arith.constant 1.000000e+00 : f32
    %167 = vector.broadcast %cst_38 : f32 to vector<2x16xf32>
    %168 = arith.addf %167, %166 : vector<2x16xf32>
    %169 = arith.divf %167, %168 : vector<2x16xf32>
    %170 = vector.extract_strided_slice %160 {offsets = [0, 16], sizes = [2, 16], strides = [1, 1]} : vector<2x64xf32> to vector<2x16xf32>
    %171 = vector.extract_strided_slice %161 {offsets = [0, 128], sizes = [2, 16], strides = [1, 1]} : vector<2x512xf32> to vector<2x16xf32>
    %172 = arith.addf %170, %171 : vector<2x16xf32>
    %173 = arith.negf %172 : vector<2x16xf32>
    %174 = math.exp %173 : vector<2x16xf32>
    %cst_39 = arith.constant 1.000000e+00 : f32
    %175 = vector.broadcast %cst_39 : f32 to vector<2x16xf32>
    %176 = arith.addf %175, %174 : vector<2x16xf32>
    %177 = arith.divf %175, %176 : vector<2x16xf32>
    %178 = vector.extract_strided_slice %160 {offsets = [0, 32], sizes = [2, 16], strides = [1, 1]} : vector<2x64xf32> to vector<2x16xf32>
    %179 = vector.extract_strided_slice %161 {offsets = [0, 256], sizes = [2, 16], strides = [1, 1]} : vector<2x512xf32> to vector<2x16xf32>
    %180 = arith.addf %178, %179 : vector<2x16xf32>
    %181 = math.tanh %180 : vector<2x16xf32>
    %182 = vector.extract_strided_slice %160 {offsets = [0, 48], sizes = [2, 16], strides = [1, 1]} : vector<2x64xf32> to vector<2x16xf32>
    %183 = vector.extract_strided_slice %161 {offsets = [0, 384], sizes = [2, 16], strides = [1, 1]} : vector<2x512xf32> to vector<2x16xf32>
    %184 = arith.addf %182, %183 : vector<2x16xf32>
    %185 = arith.negf %184 : vector<2x16xf32>
    %186 = math.exp %185 : vector<2x16xf32>
    %cst_40 = arith.constant 1.000000e+00 : f32
    %187 = vector.broadcast %cst_40 : f32 to vector<2x16xf32>
    %188 = arith.addf %187, %186 : vector<2x16xf32>
    %189 = arith.divf %187, %188 : vector<2x16xf32>
    %190 = arith.mulf %177, %152 : vector<2x16xf32>
    %191 = arith.mulf %169, %181 : vector<2x16xf32>
    %192 = arith.addf %190, %191 : vector<2x16xf32>
    %193 = math.tanh %192 : vector<2x16xf32>
    %194 = arith.mulf %189, %193 : vector<2x16xf32>
    %195 = arith.truncf %194 : vector<2x16xf32> to vector<2x16xbf16>
    %c4 = arith.constant 4 : index
    %c0_41 = arith.constant 0 : index
    %c0_42 = arith.constant 0 : index
    %196 = vector.load %arg4[%c4, %c0_41, %c0_42] : memref<8x16x512xbf16, #tpu.memory_space<vmem>>, vector<1x16x512xbf16>
    %197 = vector.shape_cast %196 : vector<1x16x512xbf16> to vector<16x512xbf16>
    %cst_43 = arith.constant dense<0.000000e+00> : vector<2x512xf32>
    %198 = tpu.matmul %195, %197, %cst_43 {dimension_numbers = #tpu.dot_dimension_numbers<[1], [0], [0], [1], [0, 0, 1, 1], [], []>} : vector<2x16xbf16>, vector<16x512xbf16>, vector<2x512xf32> -> vector<2x512xf32>
    %199 = arith.addf %159, %198 : vector<2x512xf32>
    %200 = vector.extract_strided_slice %5 {offsets = [10, 0], sizes = [2, 64], strides = [1, 1]} : vector<16x64xf32> to vector<2x64xf32>
    %cst_44 = arith.constant dense<0.000000e+00> : vector<2x512xf32>
    %201 = tpu.matmul %195, %6, %cst_44 {dimension_numbers = #tpu.dot_dimension_numbers<[1], [0], [0], [1], [0, 0, 1, 1], [], []>} : vector<2x16xbf16>, vector<16x512xbf16>, vector<2x512xf32> -> vector<2x512xf32>
    %202 = vector.extract_strided_slice %200 {offsets = [0, 0], sizes = [2, 16], strides = [1, 1]} : vector<2x64xf32> to vector<2x16xf32>
    %203 = vector.extract_strided_slice %201 {offsets = [0, 0], sizes = [2, 16], strides = [1, 1]} : vector<2x512xf32> to vector<2x16xf32>
    %204 = arith.addf %202, %203 : vector<2x16xf32>
    %205 = arith.negf %204 : vector<2x16xf32>
    %206 = math.exp %205 : vector<2x16xf32>
    %cst_45 = arith.constant 1.000000e+00 : f32
    %207 = vector.broadcast %cst_45 : f32 to vector<2x16xf32>
    %208 = arith.addf %207, %206 : vector<2x16xf32>
    %209 = arith.divf %207, %208 : vector<2x16xf32>
    %210 = vector.extract_strided_slice %200 {offsets = [0, 16], sizes = [2, 16], strides = [1, 1]} : vector<2x64xf32> to vector<2x16xf32>
    %211 = vector.extract_strided_slice %201 {offsets = [0, 128], sizes = [2, 16], strides = [1, 1]} : vector<2x512xf32> to vector<2x16xf32>
    %212 = arith.addf %210, %211 : vector<2x16xf32>
    %213 = arith.negf %212 : vector<2x16xf32>
    %214 = math.exp %213 : vector<2x16xf32>
    %cst_46 = arith.constant 1.000000e+00 : f32
    %215 = vector.broadcast %cst_46 : f32 to vector<2x16xf32>
    %216 = arith.addf %215, %214 : vector<2x16xf32>
    %217 = arith.divf %215, %216 : vector<2x16xf32>
    %218 = vector.extract_strided_slice %200 {offsets = [0, 32], sizes = [2, 16], strides = [1, 1]} : vector<2x64xf32> to vector<2x16xf32>
    %219 = vector.extract_strided_slice %201 {offsets = [0, 256], sizes = [2, 16], strides = [1, 1]} : vector<2x512xf32> to vector<2x16xf32>
    %220 = arith.addf %218, %219 : vector<2x16xf32>
    %221 = math.tanh %220 : vector<2x16xf32>
    %222 = vector.extract_strided_slice %200 {offsets = [0, 48], sizes = [2, 16], strides = [1, 1]} : vector<2x64xf32> to vector<2x16xf32>
    %223 = vector.extract_strided_slice %201 {offsets = [0, 384], sizes = [2, 16], strides = [1, 1]} : vector<2x512xf32> to vector<2x16xf32>
    %224 = arith.addf %222, %223 : vector<2x16xf32>
    %225 = arith.negf %224 : vector<2x16xf32>
    %226 = math.exp %225 : vector<2x16xf32>
    %cst_47 = arith.constant 1.000000e+00 : f32
    %227 = vector.broadcast %cst_47 : f32 to vector<2x16xf32>
    %228 = arith.addf %227, %226 : vector<2x16xf32>
    %229 = arith.divf %227, %228 : vector<2x16xf32>
    %230 = arith.mulf %217, %192 : vector<2x16xf32>
    %231 = arith.mulf %209, %221 : vector<2x16xf32>
    %232 = arith.addf %230, %231 : vector<2x16xf32>
    %233 = math.tanh %232 : vector<2x16xf32>
    %234 = arith.mulf %229, %233 : vector<2x16xf32>
    %235 = arith.truncf %234 : vector<2x16xf32> to vector<2x16xbf16>
    %c5 = arith.constant 5 : index
    %c0_48 = arith.constant 0 : index
    %c0_49 = arith.constant 0 : index
    %236 = vector.load %arg4[%c5, %c0_48, %c0_49] : memref<8x16x512xbf16, #tpu.memory_space<vmem>>, vector<1x16x512xbf16>
    %237 = vector.shape_cast %236 : vector<1x16x512xbf16> to vector<16x512xbf16>
    %cst_50 = arith.constant dense<0.000000e+00> : vector<2x512xf32>
    %238 = tpu.matmul %235, %237, %cst_50 {dimension_numbers = #tpu.dot_dimension_numbers<[1], [0], [0], [1], [0, 0, 1, 1], [], []>} : vector<2x16xbf16>, vector<16x512xbf16>, vector<2x512xf32> -> vector<2x512xf32>
    %239 = arith.addf %199, %238 : vector<2x512xf32>
    %240 = vector.extract_strided_slice %5 {offsets = [12, 0], sizes = [2, 64], strides = [1, 1]} : vector<16x64xf32> to vector<2x64xf32>
    %cst_51 = arith.constant dense<0.000000e+00> : vector<2x512xf32>
    %241 = tpu.matmul %235, %6, %cst_51 {dimension_numbers = #tpu.dot_dimension_numbers<[1], [0], [0], [1], [0, 0, 1, 1], [], []>} : vector<2x16xbf16>, vector<16x512xbf16>, vector<2x512xf32> -> vector<2x512xf32>
    %242 = vector.extract_strided_slice %240 {offsets = [0, 0], sizes = [2, 16], strides = [1, 1]} : vector<2x64xf32> to vector<2x16xf32>
    %243 = vector.extract_strided_slice %241 {offsets = [0, 0], sizes = [2, 16], strides = [1, 1]} : vector<2x512xf32> to vector<2x16xf32>
    %244 = arith.addf %242, %243 : vector<2x16xf32>
    %245 = arith.negf %244 : vector<2x16xf32>
    %246 = math.exp %245 : vector<2x16xf32>
    %cst_52 = arith.constant 1.000000e+00 : f32
    %247 = vector.broadcast %cst_52 : f32 to vector<2x16xf32>
    %248 = arith.addf %247, %246 : vector<2x16xf32>
    %249 = arith.divf %247, %248 : vector<2x16xf32>
    %250 = vector.extract_strided_slice %240 {offsets = [0, 16], sizes = [2, 16], strides = [1, 1]} : vector<2x64xf32> to vector<2x16xf32>
    %251 = vector.extract_strided_slice %241 {offsets = [0, 128], sizes = [2, 16], strides = [1, 1]} : vector<2x512xf32> to vector<2x16xf32>
    %252 = arith.addf %250, %251 : vector<2x16xf32>
    %253 = arith.negf %252 : vector<2x16xf32>
    %254 = math.exp %253 : vector<2x16xf32>
    %cst_53 = arith.constant 1.000000e+00 : f32
    %255 = vector.broadcast %cst_53 : f32 to vector<2x16xf32>
    %256 = arith.addf %255, %254 : vector<2x16xf32>
    %257 = arith.divf %255, %256 : vector<2x16xf32>
    %258 = vector.extract_strided_slice %240 {offsets = [0, 32], sizes = [2, 16], strides = [1, 1]} : vector<2x64xf32> to vector<2x16xf32>
    %259 = vector.extract_strided_slice %241 {offsets = [0, 256], sizes = [2, 16], strides = [1, 1]} : vector<2x512xf32> to vector<2x16xf32>
    %260 = arith.addf %258, %259 : vector<2x16xf32>
    %261 = math.tanh %260 : vector<2x16xf32>
    %262 = vector.extract_strided_slice %240 {offsets = [0, 48], sizes = [2, 16], strides = [1, 1]} : vector<2x64xf32> to vector<2x16xf32>
    %263 = vector.extract_strided_slice %241 {offsets = [0, 384], sizes = [2, 16], strides = [1, 1]} : vector<2x512xf32> to vector<2x16xf32>
    %264 = arith.addf %262, %263 : vector<2x16xf32>
    %265 = arith.negf %264 : vector<2x16xf32>
    %266 = math.exp %265 : vector<2x16xf32>
    %cst_54 = arith.constant 1.000000e+00 : f32
    %267 = vector.broadcast %cst_54 : f32 to vector<2x16xf32>
    %268 = arith.addf %267, %266 : vector<2x16xf32>
    %269 = arith.divf %267, %268 : vector<2x16xf32>
    %270 = arith.mulf %257, %232 : vector<2x16xf32>
    %271 = arith.mulf %249, %261 : vector<2x16xf32>
    %272 = arith.addf %270, %271 : vector<2x16xf32>
    %273 = math.tanh %272 : vector<2x16xf32>
    %274 = arith.mulf %269, %273 : vector<2x16xf32>
    %275 = arith.truncf %274 : vector<2x16xf32> to vector<2x16xbf16>
    %c6 = arith.constant 6 : index
    %c0_55 = arith.constant 0 : index
    %c0_56 = arith.constant 0 : index
    %276 = vector.load %arg4[%c6, %c0_55, %c0_56] : memref<8x16x512xbf16, #tpu.memory_space<vmem>>, vector<1x16x512xbf16>
    %277 = vector.shape_cast %276 : vector<1x16x512xbf16> to vector<16x512xbf16>
    %cst_57 = arith.constant dense<0.000000e+00> : vector<2x512xf32>
    %278 = tpu.matmul %275, %277, %cst_57 {dimension_numbers = #tpu.dot_dimension_numbers<[1], [0], [0], [1], [0, 0, 1, 1], [], []>} : vector<2x16xbf16>, vector<16x512xbf16>, vector<2x512xf32> -> vector<2x512xf32>
    %279 = arith.addf %239, %278 : vector<2x512xf32>
    %280 = vector.extract_strided_slice %5 {offsets = [14, 0], sizes = [2, 64], strides = [1, 1]} : vector<16x64xf32> to vector<2x64xf32>
    %cst_58 = arith.constant dense<0.000000e+00> : vector<2x512xf32>
    %281 = tpu.matmul %275, %6, %cst_58 {dimension_numbers = #tpu.dot_dimension_numbers<[1], [0], [0], [1], [0, 0, 1, 1], [], []>} : vector<2x16xbf16>, vector<16x512xbf16>, vector<2x512xf32> -> vector<2x512xf32>
    %282 = vector.extract_strided_slice %280 {offsets = [0, 0], sizes = [2, 16], strides = [1, 1]} : vector<2x64xf32> to vector<2x16xf32>
    %283 = vector.extract_strided_slice %281 {offsets = [0, 0], sizes = [2, 16], strides = [1, 1]} : vector<2x512xf32> to vector<2x16xf32>
    %284 = arith.addf %282, %283 : vector<2x16xf32>
    %285 = arith.negf %284 : vector<2x16xf32>
    %286 = math.exp %285 : vector<2x16xf32>
    %cst_59 = arith.constant 1.000000e+00 : f32
    %287 = vector.broadcast %cst_59 : f32 to vector<2x16xf32>
    %288 = arith.addf %287, %286 : vector<2x16xf32>
    %289 = arith.divf %287, %288 : vector<2x16xf32>
    %290 = vector.extract_strided_slice %280 {offsets = [0, 16], sizes = [2, 16], strides = [1, 1]} : vector<2x64xf32> to vector<2x16xf32>
    %291 = vector.extract_strided_slice %281 {offsets = [0, 128], sizes = [2, 16], strides = [1, 1]} : vector<2x512xf32> to vector<2x16xf32>
    %292 = arith.addf %290, %291 : vector<2x16xf32>
    %293 = arith.negf %292 : vector<2x16xf32>
    %294 = math.exp %293 : vector<2x16xf32>
    %cst_60 = arith.constant 1.000000e+00 : f32
    %295 = vector.broadcast %cst_60 : f32 to vector<2x16xf32>
    %296 = arith.addf %295, %294 : vector<2x16xf32>
    %297 = arith.divf %295, %296 : vector<2x16xf32>
    %298 = vector.extract_strided_slice %280 {offsets = [0, 32], sizes = [2, 16], strides = [1, 1]} : vector<2x64xf32> to vector<2x16xf32>
    %299 = vector.extract_strided_slice %281 {offsets = [0, 256], sizes = [2, 16], strides = [1, 1]} : vector<2x512xf32> to vector<2x16xf32>
    %300 = arith.addf %298, %299 : vector<2x16xf32>
    %301 = math.tanh %300 : vector<2x16xf32>
    %302 = vector.extract_strided_slice %280 {offsets = [0, 48], sizes = [2, 16], strides = [1, 1]} : vector<2x64xf32> to vector<2x16xf32>
    %303 = vector.extract_strided_slice %281 {offsets = [0, 384], sizes = [2, 16], strides = [1, 1]} : vector<2x512xf32> to vector<2x16xf32>
    %304 = arith.addf %302, %303 : vector<2x16xf32>
    %305 = arith.negf %304 : vector<2x16xf32>
    %306 = math.exp %305 : vector<2x16xf32>
    %cst_61 = arith.constant 1.000000e+00 : f32
    %307 = vector.broadcast %cst_61 : f32 to vector<2x16xf32>
    %308 = arith.addf %307, %306 : vector<2x16xf32>
    %309 = arith.divf %307, %308 : vector<2x16xf32>
    %310 = arith.mulf %297, %272 : vector<2x16xf32>
    %311 = arith.mulf %289, %301 : vector<2x16xf32>
    %312 = arith.addf %310, %311 : vector<2x16xf32>
    %313 = math.tanh %312 : vector<2x16xf32>
    %314 = arith.mulf %309, %313 : vector<2x16xf32>
    %315 = arith.truncf %314 : vector<2x16xf32> to vector<2x16xbf16>
    %c7 = arith.constant 7 : index
    %c0_62 = arith.constant 0 : index
    %c0_63 = arith.constant 0 : index
    %316 = vector.load %arg4[%c7, %c0_62, %c0_63] : memref<8x16x512xbf16, #tpu.memory_space<vmem>>, vector<1x16x512xbf16>
    %317 = vector.shape_cast %316 : vector<1x16x512xbf16> to vector<16x512xbf16>
    %cst_64 = arith.constant dense<0.000000e+00> : vector<2x512xf32>
    %318 = tpu.matmul %315, %317, %cst_64 {dimension_numbers = #tpu.dot_dimension_numbers<[1], [0], [0], [1], [0, 0, 1, 1], [], []>} : vector<2x16xbf16>, vector<16x512xbf16>, vector<2x512xf32> -> vector<2x512xf32>
    %319 = arith.addf %279, %318 : vector<2x512xf32>
    %c0_65 = arith.constant 0 : index
    %c0_66 = arith.constant 0 : index
    %320 = vector.load %arg5[%c0_65, %c0_66] : memref<1x512xf32, #tpu.memory_space<vmem>>, vector<1x512xf32>
    %321 = vector.broadcast %320 : vector<1x512xf32> to vector<2x512xf32>
    %322 = arith.addf %319, %321 : vector<2x512xf32>
    %cst_67 = arith.constant 0.000000e+00 : f32
    %323 = vector.broadcast %cst_67 : f32 to vector<2x512xf32>
    %324 = arith.maximumf %322, %323 : vector<2x512xf32>
    %325 = arith.truncf %324 : vector<2x512xf32> to vector<2x512xbf16>
    %c0_68 = arith.constant 0 : index
    %c0_69 = arith.constant 0 : index
    %326 = vector.load %arg6[%c0_68, %c0_69] : memref<512x8xbf16, #tpu.memory_space<vmem>>, vector<512x8xbf16>
    %cst_70 = arith.constant dense<0.000000e+00> : vector<2x8xf32>
    %327 = tpu.matmul %325, %326, %cst_70 {dimension_numbers = #tpu.dot_dimension_numbers<[1], [0], [0], [1], [0, 0, 1, 1], [], []>} : vector<2x512xbf16>, vector<512x8xbf16>, vector<2x8xf32> -> vector<2x8xf32>
    %c0_71 = arith.constant 0 : index
    %c0_72 = arith.constant 0 : index
    %328 = vector.load %arg7[%c0_71, %c0_72] : memref<1x8xf32, #tpu.memory_space<vmem>>, vector<1x8xf32>
    %329 = vector.broadcast %328 : vector<1x8xf32> to vector<2x8xf32>
    %330 = arith.addf %327, %329 : vector<2x8xf32>
    %c0_73 = arith.constant 0 : index
    %c0_74 = arith.constant 0 : index
    %331 = vector.load %arg8[%c0_73, %c0_74] : memref<2x8xf32, #tpu.memory_space<vmem>>, vector<2x8xf32>
    tpu.vector_store %arg8[%c0_73, %c0_74], %330 {strides = array<i32>} : memref<2x8xf32, #tpu.memory_space<vmem>>, vector<2x8xf32>,
    return
  }
}

</mosaic_0001>

<llo_original>
// kernel: tpu_custom_call.1
$region0: #{tpu_custom_call.1}
  #allocation0 [shape = 'u32[]', space=smem, size = 0x4, offset = 0x4, fixed_abs, tag = 'smem constant byte address 0x4 - core index']
  #allocation1 [shape = 'u32[144,128]{1,0:T(1,128)}', space=vmem, size = 0x12000, scoped, tag = 'internal scratch']
  %s0 = inlined_call_operand.vmem [shape: bf16[16,512], index: 0, kind: input, shape index: {}]
  %s1 = inlined_call_operand.vmem [shape: bf16[512,64], index: 1, kind: input, shape index: {}]
  %s2 = inlined_call_operand.vmem [shape: f32[1,64], index: 2, kind: input, shape index: {}]
  %s3 = inlined_call_operand.vmem [shape: bf16[16,512], index: 3, kind: input, shape index: {}]
  %s4 = inlined_call_operand.vmem [shape: bf16[8,16,512], index: 4, kind: input, shape index: {}]
  %s5 = inlined_call_operand.vmem [shape: f32[1,512], index: 5, kind: input, shape index: {}]
  %s6 = inlined_call_operand.vmem [shape: bf16[512,8], index: 6, kind: input, shape index: {}]
  %s7 = inlined_call_operand.vmem [shape: f32[1,8], index: 7, kind: input, shape index: {}]
  %s8 = inlined_call_operand.hbm [shape: f32[2,8], index: 8, kind: output, shape index: {}]
  %s9 = sld [smem:[#allocation0]]
  $region42: #{tpu_custom_call.1} parent=0
    _
  %s11 = ssub.s32 1, %s9
  %s12 = scalar_select 0, %s11, %s9
  $region1: #{tpu_custom_call.1} parent=0
    #allocation2 [shape = 'u8[1024]{0}', space=vmem, size = 0x400, scoped, tag = 'output window, operand 0, single buffered']
    #allocation3 [shape = 's32[1]{0}', space=sflag, size = 0x4, scoped, tag = 'scoped memory for tpu_custom_call.1']
    %13 = vsyncpa [#allocation3], 0
    // Predicated region
    $region2: #{tpu_custom_call.1} parent=1 // pred_check
      _
    $region3: #{tpu_custom_call.1} parent=1 // pred_check_branch
      %15 = sbr.rel (0) target = $region5
    $region4: #{tpu_custom_call.1} parent=1 // pred_region
      _
    $region5: #{tpu_custom_call.1} parent=1 // pred_fallthru
      _
    // Predicated region
    $region6: #{tpu_custom_call.1} parent=1 // pred_check
      _
    $region7: #{tpu_custom_call.1} parent=1 // pred_check_branch
      %17 = sbr.rel (0) target = $region9
    $region8: #{tpu_custom_call.1} parent=1 // pred_region
      _
    $region9: #{tpu_custom_call.1} parent=1 // pred_fallthru
      _
    // Predicated region
    $region10: #{tpu_custom_call.1} parent=1 // pred_check
      _
    $region11: #{tpu_custom_call.1} parent=1 // pred_check_branch
      %19 = sbr.rel (0) target = $region13
    $region12: #{tpu_custom_call.1} parent=1 // pred_region
      _
    $region13: #{tpu_custom_call.1} parent=1 // pred_fallthru
      _
    // Predicated region
    $region14: #{tpu_custom_call.1} parent=1 // pred_check
      _
    $region15: #{tpu_custom_call.1} parent=1 // pred_check_branch
      %21 = sbr.rel (0) target = $region17
    $region16: #{tpu_custom_call.1} parent=1 // pred_region
      _
    $region17: #{tpu_custom_call.1} parent=1 // pred_fallthru
      _
    // Predicated region
    $region18: #{tpu_custom_call.1} parent=1 // pred_check
      _
    $region19: #{tpu_custom_call.1} parent=1 // pred_check_branch
      %23 = sbr.rel (0) target = $region21
    $region20: #{tpu_custom_call.1} parent=1 // pred_region
      _
    $region21: #{tpu_custom_call.1} parent=1 // pred_fallthru
      _
    // Predicated region
    $region22: #{tpu_custom_call.1} parent=1 // pred_check
      _
    $region23: #{tpu_custom_call.1} parent=1 // pred_check_branch
      %25 = sbr.rel (0) target = $region25
    $region24: #{tpu_custom_call.1} parent=1 // pred_region
      _
    $region25: #{tpu_custom_call.1} parent=1 // pred_fallthru
      _
    // Predicated region
    $region26: #{tpu_custom_call.1} parent=1 // pred_check
      _
    $region27: #{tpu_custom_call.1} parent=1 // pred_check_branch
      %27 = sbr.rel (0) target = $region29
    $region28: #{tpu_custom_call.1} parent=1 // pred_region
      _
    $region29: #{tpu_custom_call.1} parent=1 // pred_fallthru
      _
    // Predicated region
    $region30: #{tpu_custom_call.1} parent=1 // pred_check
      _
    $region31: #{tpu_custom_call.1} parent=1 // pred_check_branch
      %29 = sbr.rel (0) target = $region33
    $region32: #{tpu_custom_call.1} parent=1 // pred_region
      _
    $region33: #{tpu_custom_call.1} parent=1 // pred_fallthru
      _
    %v31 = vld [vmem:[%s0] sm:$0xff]
    %v32 = vld [vmem:[%s0 + $0x8] sm:$0xff]
    %v33 = vld [vmem:[%s0 + $0x10] sm:$0xff]
    %v34 = vld [vmem:[%s0 + $0x18] sm:$0xff]
    %v35 = vld [vmem:[%s1] sm:$0xf]
    %v36 = vld [vmem:[%s1 + $0x4] sm:$0xf]
    %v37 = vld [vmem:[%s1 + $0x8] sm:$0xf]
    %v38 = vld [vmem:[%s1 + $0xc] sm:$0xf]
    %v39 = vld [vmem:[%s1 + $0x10] sm:$0xf]
    %v40 = vld [vmem:[%s1 + $0x14] sm:$0xf]
    %v41 = vld [vmem:[%s1 + $0x18] sm:$0xf]
    %v42 = vld [vmem:[%s1 + $0x1c] sm:$0xf]
    %v43 = vld [vmem:[%s1 + $0x20] sm:$0xf]
    %v44 = vld [vmem:[%s1 + $0x24] sm:$0xf]
    %v45 = vld [vmem:[%s1 + $0x28] sm:$0xf]
    %v46 = vld [vmem:[%s1 + $0x2c] sm:$0xf]
    %v47 = vld [vmem:[%s1 + $0x30] sm:$0xf]
    %v48 = vld [vmem:[%s1 + $0x34] sm:$0xf]
    %v49 = vld [vmem:[%s1 + $0x38] sm:$0xf]
    %v50 = vld [vmem:[%s1 + $0x3c] sm:$0xf]
    %v51 = vld [vmem:[%s1 + $0x40] sm:$0xf]
    %v52 = vld [vmem:[%s1 + $0x44] sm:$0xf]
    %v53 = vld [vmem:[%s1 + $0x48] sm:$0xf]
    %v54 = vld [vmem:[%s1 + $0x4c] sm:$0xf]
    %v55 = vld [vmem:[%s1 + $0x50] sm:$0xf]
    %v56 = vld [vmem:[%s1 + $0x54] sm:$0xf]
    %v57 = vld [vmem:[%s1 + $0x58] sm:$0xf]
    %v58 = vld [vmem:[%s1 + $0x5c] sm:$0xf]
    %v59 = vld [vmem:[%s1 + $0x60] sm:$0xf]
    %v60 = vld [vmem:[%s1 + $0x64] sm:$0xf]
    %v61 = vld [vmem:[%s1 + $0x68] sm:$0xf]
    %v62 = vld [vmem:[%s1 + $0x6c] sm:$0xf]
    %v63 = vld [vmem:[%s1 + $0x70] sm:$0xf]
    %v64 = vld [vmem:[%s1 + $0x74] sm:$0xf]
    %v65 = vld [vmem:[%s1 + $0x78] sm:$0xf]
    %v66 = vld [vmem:[%s1 + $0x7c] sm:$0xf]
    %v67 = vld [vmem:[%s1 + $0x80] sm:$0xf]
    %v68 = vld [vmem:[%s1 + $0x84] sm:$0xf]
    %v69 = vld [vmem:[%s1 + $0x88] sm:$0xf]
    %v70 = vld [vmem:[%s1 + $0x8c] sm:$0xf]
    %v71 = vld [vmem:[%s1 + $0x90] sm:$0xf]
    %v72 = vld [vmem:[%s1 + $0x94] sm:$0xf]
    %v73 = vld [vmem:[%s1 + $0x98] sm:$0xf]
    %v74 = vld [vmem:[%s1 + $0x9c] sm:$0xf]
    %v75 = vld [vmem:[%s1 + $0xa0] sm:$0xf]
    %v76 = vld [vmem:[%s1 + $0xa4] sm:$0xf]
    %v77 = vld [vmem:[%s1 + $0xa8] sm:$0xf]
    %v78 = vld [vmem:[%s1 + $0xac] sm:$0xf]
    %v79 = vld [vmem:[%s1 + $0xb0] sm:$0xf]
    %v80 = vld [vmem:[%s1 + $0xb4] sm:$0xf]
    %v81 = vld [vmem:[%s1 + $0xb8] sm:$0xf]
    %v82 = vld [vmem:[%s1 + $0xbc] sm:$0xf]
    %v83 = vld [vmem:[%s1 + $0xc0] sm:$0xf]
    %v84 = vld [vmem:[%s1 + $0xc4] sm:$0xf]
    %v85 = vld [vmem:[%s1 + $0xc8] sm:$0xf]
    %v86 = vld [vmem:[%s1 + $0xcc] sm:$0xf]
    %v87 = vld [vmem:[%s1 + $0xd0] sm:$0xf]
    %v88 = vld [vmem:[%s1 + $0xd4] sm:$0xf]
    %v89 = vld [vmem:[%s1 + $0xd8] sm:$0xf]
    %v90 = vld [vmem:[%s1 + $0xdc] sm:$0xf]
    %v91 = vld [vmem:[%s1 + $0xe0] sm:$0xf]
    %v92 = vld [vmem:[%s1 + $0xe4] sm:$0xf]
    %v93 = vld [vmem:[%s1 + $0xe8] sm:$0xf]
    %v94 = vld [vmem:[%s1 + $0xec] sm:$0xf]
    %v95 = vld [vmem:[%s1 + $0xf0] sm:$0xf]
    %v96 = vld [vmem:[%s1 + $0xf4] sm:$0xf]
    %v97 = vld [vmem:[%s1 + $0xf8] sm:$0xf]
    %v98 = vld [vmem:[%s1 + $0xfc] sm:$0xf]
    %v99 = vld [vmem:[%s2] sm:$0x1]
    %v101 = vlaneseq
    %v102 = vshrl.u32 %v101, 7
    %v103 = vsub.s32 0, %v102
    %v104 = vrot.slane %v99, %v103
    %v110 = vunpack.c.l.b16 %v31
    %v111 = vunpack.c.h.b16 %v31
    %v112 = vunpack.c.l.b16 %v32
    %v113 = vunpack.c.h.b16 %v32
    %v114 = vunpack.c.l.b16 %v33
    %v115 = vunpack.c.h.b16 %v33
    %v116 = vunpack.c.l.b16 %v34
    %v117 = vunpack.c.h.b16 %v34
    %v118 = vpack.c.b16 %v114, %v110
    %v119 = vpack.c.b16 %v115, %v111
    %v120 = vpack.c.b16 %v116, %v112
    %v121 = vpack.c.b16 %v117, %v113
    %v190 = vunpack.c.l.b16 %v35
    %v191 = vunpack.c.l.b16 %v36
    %v192 = vunpack.c.l.b16 %v37
    %v193 = vunpack.c.l.b16 %v38
    %v194 = vunpack.c.l.b16 %v39
    %v195 = vunpack.c.l.b16 %v40
    %v196 = vunpack.c.l.b16 %v41
    %v197 = vunpack.c.l.b16 %v42
    %v198 = vunpack.c.l.b16 %v43
    %v199 = vunpack.c.l.b16 %v44
    %v200 = vunpack.c.l.b16 %v45
    %v201 = vunpack.c.l.b16 %v46
    %v202 = vunpack.c.l.b16 %v47
    %v203 = vunpack.c.l.b16 %v48
    %v204 = vunpack.c.l.b16 %v49
    %v205 = vunpack.c.l.b16 %v50
    %v206 = vunpack.c.l.b16 %v51
    %v207 = vunpack.c.l.b16 %v52
    %v208 = vunpack.c.l.b16 %v53
    %v209 = vunpack.c.l.b16 %v54
    %v210 = vunpack.c.l.b16 %v55
    %v211 = vunpack.c.l.b16 %v56
    %v212 = vunpack.c.l.b16 %v57
    %v213 = vunpack.c.l.b16 %v58
    %v214 = vunpack.c.l.b16 %v59
    %v215 = vunpack.c.l.b16 %v60
    %v216 = vunpack.c.l.b16 %v61
    %v217 = vunpack.c.l.b16 %v62
    %v218 = vunpack.c.l.b16 %v63
    %v219 = vunpack.c.l.b16 %v64
    %v220 = vunpack.c.l.b16 %v65
    %v221 = vunpack.c.l.b16 %v66
    %v222 = vunpack.c.l.b16 %v67
    %v223 = vunpack.c.l.b16 %v68
    %v224 = vunpack.c.l.b16 %v69
    %v225 = vunpack.c.l.b16 %v70
    %v226 = vunpack.c.l.b16 %v71
    %v227 = vunpack.c.l.b16 %v72
    %v228 = vunpack.c.l.b16 %v73
    %v229 = vunpack.c.l.b16 %v74
    %v230 = vunpack.c.l.b16 %v75
    %v231 = vunpack.c.l.b16 %v76
    %v232 = vunpack.c.l.b16 %v77
    %v233 = vunpack.c.l.b16 %v78
    %v234 = vunpack.c.l.b16 %v79
    %v235 = vunpack.c.l.b16 %v80
    %v236 = vunpack.c.l.b16 %v81
    %v237 = vunpack.c.l.b16 %v82
    %v238 = vunpack.c.l.b16 %v83
    %v239 = vunpack.c.l.b16 %v84
    %v240 = vunpack.c.l.b16 %v85
    %v241 = vunpack.c.l.b16 %v86
    %v242 = vunpack.c.l.b16 %v87
    %v243 = vunpack.c.l.b16 %v88
    %v244 = vunpack.c.l.b16 %v89
    %v245 = vunpack.c.l.b16 %v90
    %v246 = vunpack.c.l.b16 %v91
    %v247 = vunpack.c.l.b16 %v92
    %v248 = vunpack.c.l.b16 %v93
    %v249 = vunpack.c.l.b16 %v94
    %v250 = vunpack.c.l.b16 %v95
    %v251 = vunpack.c.l.b16 %v96
    %v252 = vunpack.c.l.b16 %v97
    %v253 = vunpack.c.l.b16 %v98
    %v254 = vpack.c.b16 %v191, %v190
    %v255 = vpack.c.b16 %v193, %v192
    %v256 = vpack.c.b16 %v195, %v194
    %v257 = vpack.c.b16 %v197, %v196
    %v258 = vpack.c.b16 %v199, %v198
    %v259 = vpack.c.b16 %v201, %v200
    %v260 = vpack.c.b16 %v203, %v202
    %v261 = vpack.c.b16 %v205, %v204
    %v262 = vpack.c.b16 %v207, %v206
    %v263 = vpack.c.b16 %v209, %v208
    %v264 = vpack.c.b16 %v211, %v210
    %v265 = vpack.c.b16 %v213, %v212
    %v266 = vpack.c.b16 %v215, %v214
    %v267 = vpack.c.b16 %v217, %v216
    %v268 = vpack.c.b16 %v219, %v218
    %v269 = vpack.c.b16 %v221, %v220
    %v270 = vpack.c.b16 %v223, %v222
    %v271 = vpack.c.b16 %v225, %v224
    %v272 = vpack.c.b16 %v227, %v226
    %v273 = vpack.c.b16 %v229, %v228
    %v274 = vpack.c.b16 %v231, %v230
    %v275 = vpack.c.b16 %v233, %v232
    %v276 = vpack.c.b16 %v235, %v234
    %v277 = vpack.c.b16 %v237, %v236
    %v278 = vpack.c.b16 %v239, %v238
    %v279 = vpack.c.b16 %v241, %v240
    %v280 = vpack.c.b16 %v243, %v242
    %v281 = vpack.c.b16 %v245, %v244
    %v282 = vpack.c.b16 %v247, %v246
    %v283 = vpack.c.b16 %v249, %v248
    %v284 = vpack.c.b16 %v251, %v250
    %v285 = vpack.c.b16 %v253, %v252
    %318 = vmatprep.subr.bf16.mxu0 0
    %319 = vmatpush1.bf16.msra.mxu0 %v261
    %320 = vmatprep.subr.bf16.mxu0 0
    %321 = vmatpush1.bf16.msra.mxu0 %v260
    %322 = vmatprep.subr.bf16.mxu0 0
    %323 = vmatpush1.bf16.msra.mxu0 %v259
    %324 = vmatprep.subr.bf16.mxu0 0
    %325 = vmatpush1.bf16.msra.mxu0 %v258
    %326 = vmatprep.subr.bf16.mxu0 0
    %327 = vmatpush1.bf16.msra.mxu0 %v257
    %328 = vmatprep.subr.bf16.mxu0 0
    %329 = vmatpush1.bf16.msra.mxu0 %v256
    %330 = vmatprep.subr.bf16.mxu0 0
    %331 = vmatpush1.bf16.msra.mxu0 %v255
    %332 = vmatprep.subr.bf16.mxu0 0
    %333 = vmatpush1.bf16.msra.mxu0 %v254
    %334 = vmatprep.subr.bf16.mxu0 0
    %335 = vmatpush2.bf16.msra.mxu0 %v269
    %336 = vmatprep.subr.bf16.mxu0 0
    %337 = vmatpush2.bf16.msra.mxu0 %v268
    %338 = vmatprep.subr.bf16.mxu0 0
    %339 = vmatpush2.bf16.msra.mxu0 %v267
    %340 = vmatprep.subr.bf16.mxu0 0
    %341 = vmatpush2.bf16.msra.mxu0 %v266
    %342 = vmatprep.subr.bf16.mxu0 0
    %343 = vmatpush2.bf16.msra.mxu0 %v265
    %344 = vmatprep.subr.bf16.mxu0 0
    %345 = vmatpush2.bf16.msra.mxu0 %v264
    %346 = vmatprep.subr.bf16.mxu0 0
    %347 = vmatpush2.bf16.msra.mxu0 %v263
    %348 = vmatprep.subr.bf16.mxu0 0
    %349 = vmatpush2.bf16.msra.mxu0 %v262
    %350 = vmatprep.mubr.bf16.mxu0 %v119
    %351 = vmatmul.mubr.bf16.gmra.mxu0 %v118
    %v352 = vpop.f32.mrf.mxu0
    %v353 = vadd.f32 %v104, %v352
    %v354 = vpop.f32.mrf.mxu0
    %v355 = vpop.f32.mrf.mxu0
    %v356 = vadd.f32 %v104, %v355
    %v357 = vpop.f32.mrf.mxu0
    %358 = vdwg.mxu0
    %359 = vmatprep.subr.bf16.mxu0 0
    %360 = vmatpush1.bf16.msra.mxu0 %v277
    %361 = vmatprep.subr.bf16.mxu0 0
    %362 = vmatpush1.bf16.msra.mxu0 %v276
    %363 = vmatprep.subr.bf16.mxu0 0
    %364 = vmatpush1.bf16.msra.mxu0 %v275
    %365 = vmatprep.subr.bf16.mxu0 0
    %366 = vmatpush1.bf16.msra.mxu0 %v274
    %367 = vmatprep.subr.bf16.mxu0 0
    %368 = vmatpush1.bf16.msra.mxu0 %v273
    %369 = vmatprep.subr.bf16.mxu0 0
    %370 = vmatpush1.bf16.msra.mxu0 %v272
    %371 = vmatprep.subr.bf16.mxu0 0
    %372 = vmatpush1.bf16.msra.mxu0 %v271
    %373 = vmatprep.subr.bf16.mxu0 0
    %374 = vmatpush1.bf16.msra.mxu0 %v270
    %375 = vmatprep.subr.bf16.mxu0 0
    %376 = vmatpush2.bf16.msra.mxu0 %v285
    %377 = vmatprep.subr.bf16.mxu0 0
    %378 = vmatpush2.bf16.msra.mxu0 %v284
    %379 = vmatprep.subr.bf16.mxu0 0
    %380 = vmatpush2.bf16.msra.mxu0 %v283
    %381 = vmatprep.subr.bf16.mxu0 0
    %382 = vmatpush2.bf16.msra.mxu0 %v282
    %383 = vmatprep.subr.bf16.mxu0 0
    %384 = vmatpush2.bf16.msra.mxu0 %v281
    %385 = vmatprep.subr.bf16.mxu0 0
    %386 = vmatpush2.bf16.msra.mxu0 %v280
    %387 = vmatprep.subr.bf16.mxu0 0
    %388 = vmatpush2.bf16.msra.mxu0 %v279
    %389 = vmatprep.subr.bf16.mxu0 0
    %390 = vmatpush2.bf16.msra.mxu0 %v278
    %391 = vmatprep.mubr.bf16.mxu0 %v121
    %392 = vmatmul.mubr.bf16.gmra.mxu0 %v120
    %v393 = vpop.f32.mrf.mxu0
    %v394 = vadd.f32 %v353, %v393
    %v395 = vpop.f32.mrf.mxu0
    %v396 = vpop.f32.mrf.mxu0
    %v397 = vadd.f32 %v356, %v396
    %v398 = vpop.f32.mrf.mxu0
    %399 = vdwg.mxu0
    %v400 = vld [vmem:[%s3] sm:$0xff]
    %v401 = vld [vmem:[%s3 + $0x8] sm:$0xff]
    %v402 = vld [vmem:[%s3 + $0x10] sm:$0xff]
    %v403 = vld [vmem:[%s3 + $0x18] sm:$0xff]
    %v404 = vxor.u32 %v394, 2147483648
    %v405 = vmul.f32 %v404, 1.442695
    %v406 = vpow.pop %v405
    %v407 = vadd.f32 %v406, 1.0
    %v408 = vrcp.pop %v407
    %v409 = vmul.f32 1.0, %v408
    %v410 = vtanh.pop %v394
    %v411 = vmul.f32 %v409, 0.0
    %413 = vrot.lane.b32.xlu0 %v410, 96
    %v414 = vpop.permute.xlu0 %413
    %v416 = vmul.f32 %v409, %v414
    %418 = vrot.lane.b32.xlu0 %v416, 16
    %v419 = vpop.permute.xlu0 %418
    %v421 = vadd.f32 %v411, %v419
    %v422 = vtanh.pop %v421
    %424 = vrot.lane.b32.xlu0 %v422, 32
    %v425 = vpop.permute.xlu0 %424
    %v427 = vmul.f32 %v409, %v425
    %v428 = vpack.c.bf16 %v427, %v427
    %v429 = vld [vmem:[%s4] sm:$0xff]
    %v430 = vld [vmem:[%s4 + $0x8] sm:$0xff]
    %v431 = vld [vmem:[%s4 + $0x10] sm:$0xff]
    %v432 = vld [vmem:[%s4 + $0x18] sm:$0xff]
    %434 = vrot.lane.b32.xlu0 %v428, 80
    %v435 = vpop.permute.xlu0 %434
    %v440 = vunpack.c.l.b16 %v400
    %v441 = vunpack.c.h.b16 %v400
    %v442 = vunpack.c.l.b16 %v401
    %v443 = vunpack.c.h.b16 %v401
    %v444 = vunpack.c.l.b16 %v402
    %v445 = vunpack.c.h.b16 %v402
    %v446 = vunpack.c.l.b16 %v403
    %v447 = vunpack.c.h.b16 %v403
    %v448 = vpack.c.b16 %v444, %v440
    %v449 = vpack.c.b16 %v445, %v441
    %v450 = vpack.c.b16 %v446, %v442
    %v451 = vpack.c.b16 %v447, %v443
    %vm456 = vcmask 130048
    %v458 = vsel %vm456, %v435, 0
    %460 = vmatprep.subr.bf16.mxu0 0
    %461 = vmatpush1.bf16.msra.mxu0 0
    %462 = vmatprep.subr.bf16.mxu0 0
    %463 = vmatpush1.bf16.msra.mxu0 0
    %464 = vmatprep.subr.bf16.mxu0 0
    %465 = vmatpush1.bf16.msra.mxu0 0
    %466 = vmatprep.subr.bf16.mxu0 0
    %467 = vmatpush1.bf16.msra.mxu0 0
    %468 = vmatprep.subr.bf16.mxu0 0
    %469 = vmatpush1.bf16.msra.mxu0 0
    %470 = vmatprep.subr.bf16.mxu0 0
    %471 = vmatpush1.bf16.msra.mxu0 0
    %472 = vmatprep.subr.bf16.mxu0 0
    %473 = vmatpush1.bf16.msra.mxu0 0
    %474 = vmatprep.subr.bf16.mxu0 %v449
    %475 = vmatpush1.bf16.msra.mxu0 %v448
    %476 = vmatprep.subr.bf16.mxu0 0
    %477 = vmatpush2.bf16.msra.mxu0 0
    %478 = vmatprep.subr.bf16.mxu0 0
    %479 = vmatpush2.bf16.msra.mxu0 0
    %480 = vmatprep.subr.bf16.mxu0 0
    %481 = vmatpush2.bf16.msra.mxu0 0
    %482 = vmatprep.subr.bf16.mxu0 0
    %483 = vmatpush2.bf16.msra.mxu0 0
    %484 = vmatprep.subr.bf16.mxu0 0
    %485 = vmatpush2.bf16.msra.mxu0 0
    %486 = vmatprep.subr.bf16.mxu0 0
    %487 = vmatpush2.bf16.msra.mxu0 0
    %488 = vmatprep.subr.bf16.mxu0 0
    %489 = vmatpush2.bf16.msra.mxu0 0
    %490 = vmatprep.subr.bf16.mxu0 0
    %491 = vmatpush2.bf16.msra.mxu0 0
    %492 = vmatprep.mubr.bf16.mxu0 0
    %493 = vmatmul.mubr.bf16.gmra.mxu0 %v458
    %v494 = vpop.f32.mrf.mxu0
    %v495 = vadd.f32 0.0, %v494
    %v496 = vpop.f32.mrf.mxu0
    %v497 = vadd.f32 0.0, %v496
    %v498 = vpop.f32.mrf.mxu0
    %v499 = vpop.f32.mrf.mxu0
    %500 = vdwg.mxu0
    %501 = vmatprep.subr.bf16.mxu0 0
    %502 = vmatpush1.bf16.msra.mxu0 0
    %503 = vmatprep.subr.bf16.mxu0 0
    %504 = vmatpush1.bf16.msra.mxu0 0
    %505 = vmatprep.subr.bf16.mxu0 0
    %506 = vmatpush1.bf16.msra.mxu0 0
    %507 = vmatprep.subr.bf16.mxu0 0
    %508 = vmatpush1.bf16.msra.mxu0 0
    %509 = vmatprep.subr.bf16.mxu0 0
    %510 = vmatpush1.bf16.msra.mxu0 0
    %511 = vmatprep.subr.bf16.mxu0 0
    %512 = vmatpush1.bf16.msra.mxu0 0
    %513 = vmatprep.subr.bf16.mxu0 0
    %514 = vmatpush1.bf16.msra.mxu0 0
    %515 = vmatprep.subr.bf16.mxu0 %v451
    %516 = vmatpush1.bf16.msra.mxu0 %v450
    %517 = vmatprep.subr.bf16.mxu0 0
    %518 = vmatpush2.bf16.msra.mxu0 0
    %519 = vmatprep.subr.bf16.mxu0 0
    %520 = vmatpush2.bf16.msra.mxu0 0
    %521 = vmatprep.subr.bf16.mxu0 0
    %522 = vmatpush2.bf16.msra.mxu0 0
    %523 = vmatprep.subr.bf16.mxu0 0
    %524 = vmatpush2.bf16.msra.mxu0 0
    %525 = vmatprep.subr.bf16.mxu0 0
    %526 = vmatpush2.bf16.msra.mxu0 0
    %527 = vmatprep.subr.bf16.mxu0 0
    %528 = vmatpush2.bf16.msra.mxu0 0
    %529 = vmatprep.subr.bf16.mxu0 0
    %530 = vmatpush2.bf16.msra.mxu0 0
    %531 = vmatprep.subr.bf16.mxu0 0
    %532 = vmatpush2.bf16.msra.mxu0 0
    %533 = vmatprep.mubr.bf16.mxu0 0
    %534 = vmatmul.mubr.bf16.gmra.mxu0 %v458
    %v535 = vpop.f32.mrf.mxu0
    %v536 = vadd.f32 0.0, %v535
    %v537 = vpop.f32.mrf.mxu0
    %v538 = vadd.f32 0.0, %v537
    %v539 = vpop.f32.mrf.mxu0
    %v540 = vpop.f32.mrf.mxu0
    %541 = vdwg.mxu0
    %v543 = vrot.slane %v495, 6
    %v545 = vadd.f32 %v394, %v543
    %v546 = vxor.u32 %v545, 2147483648
    %v547 = vmul.f32 %v546, 1.442695
    %v548 = vpow.pop %v547
    %v549 = vadd.f32 %v548, 1.0
    %v550 = vrcp.pop %v549
    %v551 = vmul.f32 1.0, %v550
    %v553 = vrot.slane %v497, 6
    %554 = vrot.lane.b32.xlu0 %v553, 16
    %v555 = vpop.permute.xlu0 %554
    %v557 = vadd.f32 %v394, %v555
    %v558 = vxor.u32 %v557, 2147483648
    %v559 = vmul.f32 %v558, 1.442695
    %v560 = vpow.pop %v559
    %v561 = vadd.f32 %v560, 1.0
    %v562 = vrcp.pop %v561
    %v563 = vmul.f32 1.0, %v562
    %v565 = vrot.slane %v536, 6
    %566 = vrot.lane.b32.xlu0 %v565, 32
    %v567 = vpop.permute.xlu0 %566
    %v569 = vadd.f32 %v394, %v567
    %v570 = vtanh.pop %v569
    %v572 = vrot.slane %v538, 6
    %573 = vrot.lane.b32.xlu0 %v572, 48
    %v574 = vpop.permute.xlu0 %573
    %v576 = vadd.f32 %v394, %v574
    %v577 = vxor.u32 %v576, 2147483648
    %v578 = vmul.f32 %v577, 1.442695
    %v579 = vpow.pop %v578
    %v580 = vadd.f32 %v579, 1.0
    %v581 = vrcp.pop %v580
    %v582 = vmul.f32 1.0, %v581
    %v584 = vrot.slane %v421, 6
    %v586 = vmul.f32 %v563, %v584
    %588 = vrot.lane.b32.xlu0 %v570, 96
    %v589 = vpop.permute.xlu0 %588
    %v591 = vmul.f32 %v551, %v589
    %593 = vrot.lane.b32.xlu0 %v591, 16
    %v594 = vpop.permute.xlu0 %593
    %v596 = vadd.f32 %v586, %v594
    %v597 = vtanh.pop %v596
    %599 = vrot.lane.b32.xlu0 %v597, 32
    %v600 = vpop.permute.xlu0 %599
    %v602 = vmul.f32 %v582, %v600
    %v603 = vpack.c.bf16 %v602, %v602
    %s604 = scalar_lea.vmem %s4, 32
    %v605 = vld [vmem:[%s604] sm:$0xff]
    %v606 = vld [vmem:[%s604 + $0x8] sm:$0xff]
    %v607 = vld [vmem:[%s604 + $0x10] sm:$0xff]
    %v608 = vld [vmem:[%s604 + $0x18] sm:$0xff]
    %v610 = vrot.slane %v603, 1
    %611 = vrot.lane.b32.xlu0 %v610, 80
    %v612 = vpop.permute.xlu0 %611
    %v617 = vunpack.c.l.b16 %v605
    %v618 = vunpack.c.h.b16 %v605
    %v619 = vunpack.c.l.b16 %v606
    %v620 = vunpack.c.h.b16 %v606
    %v621 = vunpack.c.l.b16 %v607
    %v622 = vunpack.c.h.b16 %v607
    %v623 = vunpack.c.l.b16 %v608
    %v624 = vunpack.c.h.b16 %v608
    %v625 = vpack.c.b16 %v621, %v617
    %v626 = vpack.c.b16 %v622, %v618
    %v627 = vpack.c.b16 %v623, %v619
    %v628 = vpack.c.b16 %v624, %v620
    %v634 = vsel %vm456, %v612, 0
    %636 = vmatprep.subr.bf16.mxu0 0
    %637 = vmatpush1.bf16.msra.mxu0 0
    %638 = vmatprep.subr.bf16.mxu0 0
    %639 = vmatpush1.bf16.msra.mxu0 0
    %640 = vmatprep.subr.bf16.mxu0 0
    %641 = vmatpush1.bf16.msra.mxu0 0
    %642 = vmatprep.subr.bf16.mxu0 0
    %643 = vmatpush1.bf16.msra.mxu0 0
    %644 = vmatprep.subr.bf16.mxu0 0
    %645 = vmatpush1.bf16.msra.mxu0 0
    %646 = vmatprep.subr.bf16.mxu0 0
    %647 = vmatpush1.bf16.msra.mxu0 0
    %648 = vmatprep.subr.bf16.mxu0 0
    %649 = vmatpush1.bf16.msra.mxu0 0
    %650 = vmatprep.subr.bf16.mxu0 %v626
    %651 = vmatpush1.bf16.msra.mxu0 %v625
    %652 = vmatprep.subr.bf16.mxu0 0
    %653 = vmatpush2.bf16.msra.mxu0 0
    %654 = vmatprep.subr.bf16.mxu0 0
    %655 = vmatpush2.bf16.msra.mxu0 0
    %656 = vmatprep.subr.bf16.mxu0 0
    %657 = vmatpush2.bf16.msra.mxu0 0
    %658 = vmatprep.subr.bf16.mxu0 0
    %659 = vmatpush2.bf16.msra.mxu0 0
    %660 = vmatprep.subr.bf16.mxu0 0
    %661 = vmatpush2.bf16.msra.mxu0 0
    %662 = vmatprep.subr.bf16.mxu0 0
    %663 = vmatpush2.bf16.msra.mxu0 0
    %664 = vmatprep.subr.bf16.mxu0 0
    %665 = vmatpush2.bf16.msra.mxu0 0
    %666 = vmatprep.subr.bf16.mxu0 0
    %667 = vmatpush2.bf16.msra.mxu0 0
    %668 = vmatprep.mubr.bf16.mxu0 0
    %669 = vmatmul.mubr.bf16.gmra.mxu0 %v634
    %v670 = vpop.f32.mrf.mxu0
    %v671 = vadd.f32 0.0, %v670
    %v672 = vpop.f32.mrf.mxu0
    %v673 = vadd.f32 0.0, %v672
    %v674 = vpop.f32.mrf.mxu0
    %v675 = vpop.f32.mrf.mxu0
    %676 = vdwg.mxu0
    %677 = vmatprep.subr.bf16.mxu0 0
    %678 = vmatpush1.bf16.msra.mxu0 0
    %679 = vmatprep.subr.bf16.mxu0 0
    %680 = vmatpush1.bf16.msra.mxu0 0
    %681 = vmatprep.subr.bf16.mxu0 0
    %682 = vmatpush1.bf16.msra.mxu0 0
    %683 = vmatprep.subr.bf16.mxu0 0
    %684 = vmatpush1.bf16.msra.mxu0 0
    %685 = vmatprep.subr.bf16.mxu0 0
    %686 = vmatpush1.bf16.msra.mxu0 0
    %687 = vmatprep.subr.bf16.mxu0 0
    %688 = vmatpush1.bf16.msra.mxu0 0
    %689 = vmatprep.subr.bf16.mxu0 0
    %690 = vmatpush1.bf16.msra.mxu0 0
    %691 = vmatprep.subr.bf16.mxu0 %v628
    %692 = vmatpush1.bf16.msra.mxu0 %v627
    %693 = vmatprep.subr.bf16.mxu0 0
    %694 = vmatpush2.bf16.msra.mxu0 0
    %695 = vmatprep.subr.bf16.mxu0 0
    %696 = vmatpush2.bf16.msra.mxu0 0
    %697 = vmatprep.subr.bf16.mxu0 0
    %698 = vmatpush2.bf16.msra.mxu0 0
    %699 = vmatprep.subr.bf16.mxu0 0
    %700 = vmatpush2.bf16.msra.mxu0 0
    %701 = vmatprep.subr.bf16.mxu0 0
    %702 = vmatpush2.bf16.msra.mxu0 0
    %703 = vmatprep.subr.bf16.mxu0 0
    %704 = vmatpush2.bf16.msra.mxu0 0
    %705 = vmatprep.subr.bf16.mxu0 0
    %706 = vmatpush2.bf16.msra.mxu0 0
    %707 = vmatprep.subr.bf16.mxu0 0
    %708 = vmatpush2.bf16.msra.mxu0 0
    %709 = vmatprep.mubr.bf16.mxu0 0
    %710 = vmatmul.mubr.bf16.gmra.mxu0 %v634
    %v711 = vpop.f32.mrf.mxu0
    %v712 = vadd.f32 0.0, %v711
    %v713 = vpop.f32.mrf.mxu0
    %v714 = vadd.f32 0.0, %v713
    %v715 = vpop.f32.mrf.mxu0
    %v716 = vpop.f32.mrf.mxu0
    %717 = vdwg.mxu0
    %v722 = vunpack.c.l.b16 %v429
    %v723 = vunpack.c.h.b16 %v429
    %v724 = vunpack.c.l.b16 %v430
    %v725 = vunpack.c.h.b16 %v430
    %v726 = vunpack.c.l.b16 %v431
    %v727 = vunpack.c.h.b16 %v431
    %v728 = vunpack.c.l.b16 %v432
    %v729 = vunpack.c.h.b16 %v432
    %v730 = vpack.c.b16 %v726, %v722
    %v731 = vpack.c.b16 %v727, %v723
    %v732 = vpack.c.b16 %v728, %v724
    %v733 = vpack.c.b16 %v729, %v725
    %738 = vmatprep.subr.bf16.mxu0 0
    %739 = vmatpush1.bf16.msra.mxu0 0
    %740 = vmatprep.subr.bf16.mxu0 0
    %741 = vmatpush1.bf16.msra.mxu0 0
    %742 = vmatprep.subr.bf16.mxu0 0
    %743 = vmatpush1.bf16.msra.mxu0 0
    %744 = vmatprep.subr.bf16.mxu0 0
    %745 = vmatpush1.bf16.msra.mxu0 0
    %746 = vmatprep.subr.bf16.mxu0 0
    %747 = vmatpush1.bf16.msra.mxu0 0
    %748 = vmatprep.subr.bf16.mxu0 0
    %749 = vmatpush1.bf16.msra.mxu0 0
    %750 = vmatprep.subr.bf16.mxu0 0
    %751 = vmatpush1.bf16.msra.mxu0 0
    %752 = vmatprep.subr.bf16.mxu0 %v731
    %753 = vmatpush1.bf16.msra.mxu0 %v730
    %754 = vmatprep.subr.bf16.mxu0 0
    %755 = vmatpush2.bf16.msra.mxu0 0
    %756 = vmatprep.subr.bf16.mxu0 0
    %757 = vmatpush2.bf16.msra.mxu0 0
    %758 = vmatprep.subr.bf16.mxu0 0
    %759 = vmatpush2.bf16.msra.mxu0 0
    %760 = vmatprep.subr.bf16.mxu0 0
    %761 = vmatpush2.bf16.msra.mxu0 0
    %762 = vmatprep.subr.bf16.mxu0 0
    %763 = vmatpush2.bf16.msra.mxu0 0
    %764 = vmatprep.subr.bf16.mxu0 0
    %765 = vmatpush2.bf16.msra.mxu0 0
    %766 = vmatprep.subr.bf16.mxu0 0
    %767 = vmatpush2.bf16.msra.mxu0 0
    %768 = vmatprep.subr.bf16.mxu0 0
    %769 = vmatpush2.bf16.msra.mxu0 0
    %770 = vmatprep.mubr.bf16.mxu0 0
    %771 = vmatmul.mubr.bf16.gmra.mxu0 %v458
    %v772 = vpop.f32.mrf.mxu0
    %v773 = vadd.f32 %v671, %v772
    %v774 = vpop.f32.mrf.mxu0
    %v775 = vadd.f32 %v673, %v774
    %v776 = vpop.f32.mrf.mxu0
    %v777 = vpop.f32.mrf.mxu0
    %778 = vdwg.mxu0
    %779 = vmatprep.subr.bf16.mxu0 0
    %780 = vmatpush1.bf16.msra.mxu0 0
    %781 = vmatprep.subr.bf16.mxu0 0
    %782 = vmatpush1.bf16.msra.mxu0 0
    %783 = vmatprep.subr.bf16.mxu0 0
    %784 = vmatpush1.bf16.msra.mxu0 0
    %785 = vmatprep.subr.bf16.mxu0 0
    %786 = vmatpush1.bf16.msra.mxu0 0
    %787 = vmatprep.subr.bf16.mxu0 0
    %788 = vmatpush1.bf16.msra.mxu0 0
    %789 = vmatprep.subr.bf16.mxu0 0
    %790 = vmatpush1.bf16.msra.mxu0 0
    %791 = vmatprep.subr.bf16.mxu0 0
    %792 = vmatpush1.bf16.msra.mxu0 0
    %793 = vmatprep.subr.bf16.mxu0 %v733
    %794 = vmatpush1.bf16.msra.mxu0 %v732
    %795 = vmatprep.subr.bf16.mxu0 0
    %796 = vmatpush2.bf16.msra.mxu0 0
    %797 = vmatprep.subr.bf16.mxu0 0
    %798 = vmatpush2.bf16.msra.mxu0 0
    %799 = vmatprep.subr.bf16.mxu0 0
    %800 = vmatpush2.bf16.msra.mxu0 0
    %801 = vmatprep.subr.bf16.mxu0 0
    %802 = vmatpush2.bf16.msra.mxu0 0
    %803 = vmatprep.subr.bf16.mxu0 0
    %804 = vmatpush2.bf16.msra.mxu0 0
    %805 = vmatprep.subr.bf16.mxu0 0
    %806 = vmatpush2.bf16.msra.mxu0 0
    %807 = vmatprep.subr.bf16.mxu0 0
    %808 = vmatpush2.bf16.msra.mxu0 0
    %809 = vmatprep.subr.bf16.mxu0 0
    %810 = vmatpush2.bf16.msra.mxu0 0
    %811 = vmatprep.mubr.bf16.mxu0 0
    %812 = vmatmul.mubr.bf16.gmra.mxu0 %v458
    %v813 = vpop.f32.mrf.mxu0
    %v814 = vadd.f32 %v712, %v813
    %v815 = vpop.f32.mrf.mxu0
    %v816 = vadd.f32 %v714, %v815
    %v817 = vpop.f32.mrf.mxu0
    %v818 = vpop.f32.mrf.mxu0
    %819 = vdwg.mxu0
    %820 = vmatprep.subr.bf16.mxu0 0
    %821 = vmatpush1.bf16.msra.mxu0 0
    %822 = vmatprep.subr.bf16.mxu0 0
    %823 = vmatpush1.bf16.msra.mxu0 0
    %824 = vmatprep.subr.bf16.mxu0 0
    %825 = vmatpush1.bf16.msra.mxu0 0
    %826 = vmatprep.subr.bf16.mxu0 0
    %827 = vmatpush1.bf16.msra.mxu0 0
    %828 = vmatprep.subr.bf16.mxu0 0
    %829 = vmatpush1.bf16.msra.mxu0 0
    %830 = vmatprep.subr.bf16.mxu0 0
    %831 = vmatpush1.bf16.msra.mxu0 0
    %832 = vmatprep.subr.bf16.mxu0 0
    %833 = vmatpush1.bf16.msra.mxu0 0
    %834 = vmatprep.subr.bf16.mxu0 %v449
    %835 = vmatpush1.bf16.msra.mxu0 %v448
    %836 = vmatprep.subr.bf16.mxu0 0
    %837 = vmatpush2.bf16.msra.mxu0 0
    %838 = vmatprep.subr.bf16.mxu0 0
    %839 = vmatpush2.bf16.msra.mxu0 0
    %840 = vmatprep.subr.bf16.mxu0 0
    %841 = vmatpush2.bf16.msra.mxu0 0
    %842 = vmatprep.subr.bf16.mxu0 0
    %843 = vmatpush2.bf16.msra.mxu0 0
    %844 = vmatprep.subr.bf16.mxu0 0
    %845 = vmatpush2.bf16.msra.mxu0 0
    %846 = vmatprep.subr.bf16.mxu0 0
    %847 = vmatpush2.bf16.msra.mxu0 0
    %848 = vmatprep.subr.bf16.mxu0 0
    %849 = vmatpush2.bf16.msra.mxu0 0
    %850 = vmatprep.subr.bf16.mxu0 0
    %851 = vmatpush2.bf16.msra.mxu0 0
    %852 = vmatprep.mubr.bf16.mxu0 0
    %853 = vmatmul.mubr.bf16.gmra.mxu0 %v634
    %v854 = vpop.f32.mrf.mxu0
    %v855 = vadd.f32 0.0, %v854
    %v856 = vpop.f32.mrf.mxu0
    %v857 = vadd.f32 0.0, %v856
    %v858 = vpop.f32.mrf.mxu0
    %v859 = vpop.f32.mrf.mxu0
    %860 = vdwg.mxu0
    %861 = vmatprep.subr.bf16.mxu0 0
    %862 = vmatpush1.bf16.msra.mxu0 0
    %863 = vmatprep.subr.bf16.mxu0 0
    %864 = vmatpush1.bf16.msra.mxu0 0
    %865 = vmatprep.subr.bf16.mxu0 0
    %866 = vmatpush1.bf16.msra.mxu0 0
    %867 = vmatprep.subr.bf16.mxu0 0
    %868 = vmatpush1.bf16.msra.mxu0 0
    %869 = vmatprep.subr.bf16.mxu0 0
    %870 = vmatpush1.bf16.msra.mxu0 0
    %871 = vmatprep.subr.bf16.mxu0 0
    %872 = vmatpush1.bf16.msra.mxu0 0
    %873 = vmatprep.subr.bf16.mxu0 0
    %874 = vmatpush1.bf16.msra.mxu0 0
    %875 = vmatprep.subr.bf16.mxu0 %v451
    %876 = vmatpush1.bf16.msra.mxu0 %v450
    %877 = vmatprep.subr.bf16.mxu0 0
    %878 = vmatpush2.bf16.msra.mxu0 0
    %879 = vmatprep.subr.bf16.mxu0 0
    %880 = vmatpush2.bf16.msra.mxu0 0
    %881 = vmatprep.subr.bf16.mxu0 0
    %882 = vmatpush2.bf16.msra.mxu0 0
    %883 = vmatprep.subr.bf16.mxu0 0
    %884 = vmatpush2.bf16.msra.mxu0 0
    %885 = vmatprep.subr.bf16.mxu0 0
    %886 = vmatpush2.bf16.msra.mxu0 0
    %887 = vmatprep.subr.bf16.mxu0 0
    %888 = vmatpush2.bf16.msra.mxu0 0
    %889 = vmatprep.subr.bf16.mxu0 0
    %890 = vmatpush2.bf16.msra.mxu0 0
    %891 = vmatprep.subr.bf16.mxu0 0
    %892 = vmatpush2.bf16.msra.mxu0 0
    %893 = vmatprep.mubr.bf16.mxu0 0
    %894 = vmatmul.mubr.bf16.gmra.mxu0 %v634
    %v895 = vpop.f32.mrf.mxu0
    %v896 = vadd.f32 0.0, %v895
    %v897 = vpop.f32.mrf.mxu0
    %v898 = vadd.f32 0.0, %v897
    %v899 = vpop.f32.mrf.mxu0
    %v900 = vpop.f32.mrf.mxu0
    %901 = vdwg.mxu0
    %v903 = vrot.slane %v855, 4
    %v905 = vadd.f32 %v394, %v903
    %v906 = vxor.u32 %v905, 2147483648
    %v907 = vmul.f32 %v906, 1.442695
    %v908 = vpow.pop %v907
    %v909 = vadd.f32 %v908, 1.0
    %v910 = vrcp.pop %v909
    %v911 = vmul.f32 1.0, %v910
    %v913 = vrot.slane %v857, 4
    %914 = vrot.lane.b32.xlu0 %v913, 16
    %v915 = vpop.permute.xlu0 %914
    %v917 = vadd.f32 %v394, %v915
    %v918 = vxor.u32 %v917, 2147483648
    %v919 = vmul.f32 %v918, 1.442695
    %v920 = vpow.pop %v919
    %v921 = vadd.f32 %v920, 1.0
    %v922 = vrcp.pop %v921
    %v923 = vmul.f32 1.0, %v922
    %v925 = vrot.slane %v896, 4
    %926 = vrot.lane.b32.xlu0 %v925, 32
    %v927 = vpop.permute.xlu0 %926
    %v929 = vadd.f32 %v394, %v927
    %v930 = vtanh.pop %v929
    %v932 = vrot.slane %v898, 4
    %933 = vrot.lane.b32.xlu0 %v932, 48
    %v934 = vpop.permute.xlu0 %933
    %v936 = vadd.f32 %v394, %v934
    %v937 = vxor.u32 %v936, 2147483648
    %v938 = vmul.f32 %v937, 1.442695
    %v939 = vpow.pop %v938
    %v940 = vadd.f32 %v939, 1.0
    %v941 = vrcp.pop %v940
    %v942 = vmul.f32 1.0, %v941
    %v944 = vrot.slane %v596, 6
    %v946 = vmul.f32 %v923, %v944
    %948 = vrot.lane.b32.xlu0 %v930, 96
    %v949 = vpop.permute.xlu0 %948
    %v951 = vmul.f32 %v911, %v949
    %953 = vrot.lane.b32.xlu0 %v951, 16
    %v954 = vpop.permute.xlu0 %953
    %v956 = vadd.f32 %v946, %v954
    %v957 = vtanh.pop %v956
    %959 = vrot.lane.b32.xlu0 %v957, 32
    %v960 = vpop.permute.xlu0 %959
    %v962 = vmul.f32 %v942, %v960
    %v963 = vpack.c.bf16 %v962, %v962
    %s964 = scalar_lea.vmem %s4, 64
    %v965 = vld [vmem:[%s964] sm:$0xff]
    %v966 = vld [vmem:[%s964 + $0x8] sm:$0xff]
    %v967 = vld [vmem:[%s964 + $0x10] sm:$0xff]
    %v968 = vld [vmem:[%s964 + $0x18] sm:$0xff]
    %v970 = vrot.slane %v963, 2
    %971 = vrot.lane.b32.xlu0 %v970, 80
    %v972 = vpop.permute.xlu0 %971
    %v977 = vunpack.c.l.b16 %v965
    %v978 = vunpack.c.h.b16 %v965
    %v979 = vunpack.c.l.b16 %v966
    %v980 = vunpack.c.h.b16 %v966
    %v981 = vunpack.c.l.b16 %v967
    %v982 = vunpack.c.h.b16 %v967
    %v983 = vunpack.c.l.b16 %v968
    %v984 = vunpack.c.h.b16 %v968
    %v985 = vpack.c.b16 %v981, %v977
    %v986 = vpack.c.b16 %v982, %v978
    %v987 = vpack.c.b16 %v983, %v979
    %v988 = vpack.c.b16 %v984, %v980
    %v994 = vsel %vm456, %v972, 0
    %996 = vmatprep.subr.bf16.mxu0 0
    %997 = vmatpush1.bf16.msra.mxu0 0
    %998 = vmatprep.subr.bf16.mxu0 0
    %999 = vmatpush1.bf16.msra.mxu0 0
    %1000 = vmatprep.subr.bf16.mxu0 0
    %1001 = vmatpush1.bf16.msra.mxu0 0
    %1002 = vmatprep.subr.bf16.mxu0 0
    %1003 = vmatpush1.bf16.msra.mxu0 0
    %1004 = vmatprep.subr.bf16.mxu0 0
    %1005 = vmatpush1.bf16.msra.mxu0 0
    %1006 = vmatprep.subr.bf16.mxu0 0
    %1007 = vmatpush1.bf16.msra.mxu0 0
    %1008 = vmatprep.subr.bf16.mxu0 0
    %1009 = vmatpush1.bf16.msra.mxu0 0
    %1010 = vmatprep.subr.bf16.mxu0 %v986
    %1011 = vmatpush1.bf16.msra.mxu0 %v985
    %1012 = vmatprep.subr.bf16.mxu0 0
    %1013 = vmatpush2.bf16.msra.mxu0 0
    %1014 = vmatprep.subr.bf16.mxu0 0
    %1015 = vmatpush2.bf16.msra.mxu0 0
    %1016 = vmatprep.subr.bf16.mxu0 0
    %1017 = vmatpush2.bf16.msra.mxu0 0
    %1018 = vmatprep.subr.bf16.mxu0 0
    %1019 = vmatpush2.bf16.msra.mxu0 0
    %1020 = vmatprep.subr.bf16.mxu0 0
    %1021 = vmatpush2.bf16.msra.mxu0 0
    %1022 = vmatprep.subr.bf16.mxu0 0
    %1023 = vmatpush2.bf16.msra.mxu0 0
    %1024 = vmatprep.subr.bf16.mxu0 0
    %1025 = vmatpush2.bf16.msra.mxu0 0
    %1026 = vmatprep.subr.bf16.mxu0 0
    %1027 = vmatpush2.bf16.msra.mxu0 0
    %1028 = vmatprep.mubr.bf16.mxu0 0
    %1029 = vmatmul.mubr.bf16.gmra.mxu0 %v994
    %v1030 = vpop.f32.mrf.mxu0
    %v1031 = vadd.f32 0.0, %v1030
    %v1032 = vpop.f32.mrf.mxu0
    %v1033 = vadd.f32 0.0, %v1032
    %v1034 = vpop.f32.mrf.mxu0
    %v1035 = vpop.f32.mrf.mxu0
    %1036 = vdwg.mxu0
    %1037 = vmatprep.subr.bf16.mxu0 0
    %1038 = vmatpush1.bf16.msra.mxu0 0
    %1039 = vmatprep.subr.bf16.mxu0 0
    %1040 = vmatpush1.bf16.msra.mxu0 0
    %1041 = vmatprep.subr.bf16.mxu0 0
    %1042 = vmatpush1.bf16.msra.mxu0 0
    %1043 = vmatprep.subr.bf16.mxu0 0
    %1044 = vmatpush1.bf16.msra.mxu0 0
    %1045 = vmatprep.subr.bf16.mxu0 0
    %1046 = vmatpush1.bf16.msra.mxu0 0
    %1047 = vmatprep.subr.bf16.mxu0 0
    %1048 = vmatpush1.bf16.msra.mxu0 0
    %1049 = vmatprep.subr.bf16.mxu0 0
    %1050 = vmatpush1.bf16.msra.mxu0 0
    %1051 = vmatprep.subr.bf16.mxu0 %v988
    %1052 = vmatpush1.bf16.msra.mxu0 %v987
    %1053 = vmatprep.subr.bf16.mxu0 0
    %1054 = vmatpush2.bf16.msra.mxu0 0
    %1055 = vmatprep.subr.bf16.mxu0 0
    %1056 = vmatpush2.bf16.msra.mxu0 0
    %1057 = vmatprep.subr.bf16.mxu0 0
    %1058 = vmatpush2.bf16.msra.mxu0 0
    %1059 = vmatprep.subr.bf16.mxu0 0
    %1060 = vmatpush2.bf16.msra.mxu0 0
    %1061 = vmatprep.subr.bf16.mxu0 0
    %1062 = vmatpush2.bf16.msra.mxu0 0
    %1063 = vmatprep.subr.bf16.mxu0 0
    %1064 = vmatpush2.bf16.msra.mxu0 0
    %1065 = vmatprep.subr.bf16.mxu0 0
    %1066 = vmatpush2.bf16.msra.mxu0 0
    %1067 = vmatprep.subr.bf16.mxu0 0
    %1068 = vmatpush2.bf16.msra.mxu0 0
    %1069 = vmatprep.mubr.bf16.mxu0 0
    %1070 = vmatmul.mubr.bf16.gmra.mxu0 %v994
    %v1071 = vpop.f32.mrf.mxu0
    %v1072 = vadd.f32 0.0, %v1071
    %v1073 = vpop.f32.mrf.mxu0
    %v1074 = vadd.f32 0.0, %v1073
    %v1075 = vpop.f32.mrf.mxu0
    %v1076 = vpop.f32.mrf.mxu0
    %1077 = vdwg.mxu0
    %v1078 = vadd.f32 %v773, %v1031
    %v1079 = vadd.f32 %v775, %v1033
    %v1080 = vadd.f32 %v814, %v1072
    %v1081 = vadd.f32 %v816, %v1074
    %1082 = vmatprep.subr.bf16.mxu0 0
    %1083 = vmatpush1.bf16.msra.mxu0 0
    %1084 = vmatprep.subr.bf16.mxu0 0
    %1085 = vmatpush1.bf16.msra.mxu0 0
    %1086 = vmatprep.subr.bf16.mxu0 0
    %1087 = vmatpush1.bf16.msra.mxu0 0
    %1088 = vmatprep.subr.bf16.mxu0 0
    %1089 = vmatpush1.bf16.msra.mxu0 0
    %1090 = vmatprep.subr.bf16.mxu0 0
    %1091 = vmatpush1.bf16.msra.mxu0 0
    %1092 = vmatprep.subr.bf16.mxu0 0
    %1093 = vmatpush1.bf16.msra.mxu0 0
    %1094 = vmatprep.subr.bf16.mxu0 0
    %1095 = vmatpush1.bf16.msra.mxu0 0
    %1096 = vmatprep.subr.bf16.mxu0 %v449
    %1097 = vmatpush1.bf16.msra.mxu0 %v448
    %1098 = vmatprep.subr.bf16.mxu0 0
    %1099 = vmatpush2.bf16.msra.mxu0 0
    %1100 = vmatprep.subr.bf16.mxu0 0
    %1101 = vmatpush2.bf16.msra.mxu0 0
    %1102 = vmatprep.subr.bf16.mxu0 0
    %1103 = vmatpush2.bf16.msra.mxu0 0
    %1104 = vmatprep.subr.bf16.mxu0 0
    %1105 = vmatpush2.bf16.msra.mxu0 0
    %1106 = vmatprep.subr.bf16.mxu0 0
    %1107 = vmatpush2.bf16.msra.mxu0 0
    %1108 = vmatprep.subr.bf16.mxu0 0
    %1109 = vmatpush2.bf16.msra.mxu0 0
    %1110 = vmatprep.subr.bf16.mxu0 0
    %1111 = vmatpush2.bf16.msra.mxu0 0
    %1112 = vmatprep.subr.bf16.mxu0 0
    %1113 = vmatpush2.bf16.msra.mxu0 0
    %1114 = vmatprep.mubr.bf16.mxu0 0
    %1115 = vmatmul.mubr.bf16.gmra.mxu0 %v994
    %v1116 = vpop.f32.mrf.mxu0
    %v1117 = vadd.f32 0.0, %v1116
    %v1118 = vpop.f32.mrf.mxu0
    %v1119 = vadd.f32 0.0, %v1118
    %v1120 = vpop.f32.mrf.mxu0
    %v1121 = vpop.f32.mrf.mxu0
    %1122 = vdwg.mxu0
    %1123 = vmatprep.subr.bf16.mxu0 0
    %1124 = vmatpush1.bf16.msra.mxu0 0
    %1125 = vmatprep.subr.bf16.mxu0 0
    %1126 = vmatpush1.bf16.msra.mxu0 0
    %1127 = vmatprep.subr.bf16.mxu0 0
    %1128 = vmatpush1.bf16.msra.mxu0 0
    %1129 = vmatprep.subr.bf16.mxu0 0
    %1130 = vmatpush1.bf16.msra.mxu0 0
    %1131 = vmatprep.subr.bf16.mxu0 0
    %1132 = vmatpush1.bf16.msra.mxu0 0
    %1133 = vmatprep.subr.bf16.mxu0 0
    %1134 = vmatpush1.bf16.msra.mxu0 0
    %1135 = vmatprep.subr.bf16.mxu0 0
    %1136 = vmatpush1.bf16.msra.mxu0 0
    %1137 = vmatprep.subr.bf16.mxu0 %v451
    %1138 = vmatpush1.bf16.msra.mxu0 %v450
    %1139 = vmatprep.subr.bf16.mxu0 0
    %1140 = vmatpush2.bf16.msra.mxu0 0
    %1141 = vmatprep.subr.bf16.mxu0 0
    %1142 = vmatpush2.bf16.msra.mxu0 0
    %1143 = vmatprep.subr.bf16.mxu0 0
    %1144 = vmatpush2.bf16.msra.mxu0 0
    %1145 = vmatprep.subr.bf16.mxu0 0
    %1146 = vmatpush2.bf16.msra.mxu0 0
    %1147 = vmatprep.subr.bf16.mxu0 0
    %1148 = vmatpush2.bf16.msra.mxu0 0
    %1149 = vmatprep.subr.bf16.mxu0 0
    %1150 = vmatpush2.bf16.msra.mxu0 0
    %1151 = vmatprep.subr.bf16.mxu0 0
    %1152 = vmatpush2.bf16.msra.mxu0 0
    %1153 = vmatprep.subr.bf16.mxu0 0
    %1154 = vmatpush2.bf16.msra.mxu0 0
    %1155 = vmatprep.mubr.bf16.mxu0 0
    %1156 = vmatmul.mubr.bf16.gmra.mxu0 %v994
    %v1157 = vpop.f32.mrf.mxu0
    %v1158 = vadd.f32 0.0, %v1157
    %v1159 = vpop.f32.mrf.mxu0
    %v1160 = vadd.f32 0.0, %v1159
    %v1161 = vpop.f32.mrf.mxu0
    %v1162 = vpop.f32.mrf.mxu0
    %1163 = vdwg.mxu0
    %v1165 = vrot.slane %v1117, 2
    %v1167 = vadd.f32 %v394, %v1165
    %v1168 = vxor.u32 %v1167, 2147483648
    %v1169 = vmul.f32 %v1168, 1.442695
    %v1170 = vpow.pop %v1169
    %v1171 = vadd.f32 %v1170, 1.0
    %v1172 = vrcp.pop %v1171
    %v1173 = vmul.f32 1.0, %v1172
    %v1175 = vrot.slane %v1119, 2
    %1176 = vrot.lane.b32.xlu0 %v1175, 16
    %v1177 = vpop.permute.xlu0 %1176
    %v1179 = vadd.f32 %v394, %v1177
    %v1180 = vxor.u32 %v1179, 2147483648
    %v1181 = vmul.f32 %v1180, 1.442695
    %v1182 = vpow.pop %v1181
    %v1183 = vadd.f32 %v1182, 1.0
    %v1184 = vrcp.pop %v1183
    %v1185 = vmul.f32 1.0, %v1184
    %v1187 = vrot.slane %v1158, 2
    %1188 = vrot.lane.b32.xlu0 %v1187, 32
    %v1189 = vpop.permute.xlu0 %1188
    %v1191 = vadd.f32 %v394, %v1189
    %v1192 = vtanh.pop %v1191
    %v1194 = vrot.slane %v1160, 2
    %1195 = vrot.lane.b32.xlu0 %v1194, 48
    %v1196 = vpop.permute.xlu0 %1195
    %v1198 = vadd.f32 %v394, %v1196
    %v1199 = vxor.u32 %v1198, 2147483648
    %v1200 = vmul.f32 %v1199, 1.442695
    %v1201 = vpow.pop %v1200
    %v1202 = vadd.f32 %v1201, 1.0
    %v1203 = vrcp.pop %v1202
    %v1204 = vmul.f32 1.0, %v1203
    %v1206 = vrot.slane %v956, 6
    %v1208 = vmul.f32 %v1185, %v1206
    %1210 = vrot.lane.b32.xlu0 %v1192, 96
    %v1211 = vpop.permute.xlu0 %1210
    %v1213 = vmul.f32 %v1173, %v1211
    %1215 = vrot.lane.b32.xlu0 %v1213, 16
    %v1216 = vpop.permute.xlu0 %1215
    %v1218 = vadd.f32 %v1208, %v1216
    %v1219 = vtanh.pop %v1218
    %1221 = vrot.lane.b32.xlu0 %v1219, 32
    %v1222 = vpop.permute.xlu0 %1221
    %v1224 = vmul.f32 %v1204, %v1222
    %v1225 = vpack.c.bf16 %v1224, %v1224
    %s1226 = scalar_lea.vmem %s4, 96
    %v1227 = vld [vmem:[%s1226] sm:$0xff]
    %v1228 = vld [vmem:[%s1226 + $0x8] sm:$0xff]
    %v1229 = vld [vmem:[%s1226 + $0x10] sm:$0xff]
    %v1230 = vld [vmem:[%s1226 + $0x18] sm:$0xff]
    %v1232 = vrot.slane %v1225, 3
    %1233 = vrot.lane.b32.xlu0 %v1232, 80
    %v1234 = vpop.permute.xlu0 %1233
    %v1239 = vunpack.c.l.b16 %v1227
    %v1240 = vunpack.c.h.b16 %v1227
    %v1241 = vunpack.c.l.b16 %v1228
    %v1242 = vunpack.c.h.b16 %v1228
    %v1243 = vunpack.c.l.b16 %v1229
    %v1244 = vunpack.c.h.b16 %v1229
    %v1245 = vunpack.c.l.b16 %v1230
    %v1246 = vunpack.c.h.b16 %v1230
    %v1247 = vpack.c.b16 %v1243, %v1239
    %v1248 = vpack.c.b16 %v1244, %v1240
    %v1249 = vpack.c.b16 %v1245, %v1241
    %v1250 = vpack.c.b16 %v1246, %v1242
    %v1256 = vsel %vm456, %v1234, 0
    %1258 = vmatprep.subr.bf16.mxu0 0
    %1259 = vmatpush1.bf16.msra.mxu0 0
    %1260 = vmatprep.subr.bf16.mxu0 0
    %1261 = vmatpush1.bf16.msra.mxu0 0
    %1262 = vmatprep.subr.bf16.mxu0 0
    %1263 = vmatpush1.bf16.msra.mxu0 0
    %1264 = vmatprep.subr.bf16.mxu0 0
    %1265 = vmatpush1.bf16.msra.mxu0 0
    %1266 = vmatprep.subr.bf16.mxu0 0
    %1267 = vmatpush1.bf16.msra.mxu0 0
    %1268 = vmatprep.subr.bf16.mxu0 0
    %1269 = vmatpush1.bf16.msra.mxu0 0
    %1270 = vmatprep.subr.bf16.mxu0 0
    %1271 = vmatpush1.bf16.msra.mxu0 0
    %1272 = vmatprep.subr.bf16.mxu0 %v1248
    %1273 = vmatpush1.bf16.msra.mxu0 %v1247
    %1274 = vmatprep.subr.bf16.mxu0 0
    %1275 = vmatpush2.bf16.msra.mxu0 0
    %1276 = vmatprep.subr.bf16.mxu0 0
    %1277 = vmatpush2.bf16.msra.mxu0 0
    %1278 = vmatprep.subr.bf16.mxu0 0
    %1279 = vmatpush2.bf16.msra.mxu0 0
    %1280 = vmatprep.subr.bf16.mxu0 0
    %1281 = vmatpush2.bf16.msra.mxu0 0
    %1282 = vmatprep.subr.bf16.mxu0 0
    %1283 = vmatpush2.bf16.msra.mxu0 0
    %1284 = vmatprep.subr.bf16.mxu0 0
    %1285 = vmatpush2.bf16.msra.mxu0 0
    %1286 = vmatprep.subr.bf16.mxu0 0
    %1287 = vmatpush2.bf16.msra.mxu0 0
    %1288 = vmatprep.subr.bf16.mxu0 0
    %1289 = vmatpush2.bf16.msra.mxu0 0
    %1290 = vmatprep.mubr.bf16.mxu0 0
    %1291 = vmatmul.mubr.bf16.gmra.mxu0 %v1256
    %v1292 = vpop.f32.mrf.mxu0
    %v1293 = vadd.f32 0.0, %v1292
    %v1294 = vpop.f32.mrf.mxu0
    %v1295 = vadd.f32 0.0, %v1294
    %v1296 = vpop.f32.mrf.mxu0
    %v1297 = vpop.f32.mrf.mxu0
    %1298 = vdwg.mxu0
    %1299 = vmatprep.subr.bf16.mxu0 0
    %1300 = vmatpush1.bf16.msra.mxu0 0
    %1301 = vmatprep.subr.bf16.mxu0 0
    %1302 = vmatpush1.bf16.msra.mxu0 0
    %1303 = vmatprep.subr.bf16.mxu0 0
    %1304 = vmatpush1.bf16.msra.mxu0 0
    %1305 = vmatprep.subr.bf16.mxu0 0
    %1306 = vmatpush1.bf16.msra.mxu0 0
    %1307 = vmatprep.subr.bf16.mxu0 0
    %1308 = vmatpush1.bf16.msra.mxu0 0
    %1309 = vmatprep.subr.bf16.mxu0 0
    %1310 = vmatpush1.bf16.msra.mxu0 0
    %1311 = vmatprep.subr.bf16.mxu0 0
    %1312 = vmatpush1.bf16.msra.mxu0 0
    %1313 = vmatprep.subr.bf16.mxu0 %v1250
    %1314 = vmatpush1.bf16.msra.mxu0 %v1249
    %1315 = vmatprep.subr.bf16.mxu0 0
    %1316 = vmatpush2.bf16.msra.mxu0 0
    %1317 = vmatprep.subr.bf16.mxu0 0
    %1318 = vmatpush2.bf16.msra.mxu0 0
    %1319 = vmatprep.subr.bf16.mxu0 0
    %1320 = vmatpush2.bf16.msra.mxu0 0
    %1321 = vmatprep.subr.bf16.mxu0 0
    %1322 = vmatpush2.bf16.msra.mxu0 0
    %1323 = vmatprep.subr.bf16.mxu0 0
    %1324 = vmatpush2.bf16.msra.mxu0 0
    %1325 = vmatprep.subr.bf16.mxu0 0
    %1326 = vmatpush2.bf16.msra.mxu0 0
    %1327 = vmatprep.subr.bf16.mxu0 0
    %1328 = vmatpush2.bf16.msra.mxu0 0
    %1329 = vmatprep.subr.bf16.mxu0 0
    %1330 = vmatpush2.bf16.msra.mxu0 0
    %1331 = vmatprep.mubr.bf16.mxu0 0
    %1332 = vmatmul.mubr.bf16.gmra.mxu0 %v1256
    %v1333 = vpop.f32.mrf.mxu0
    %v1334 = vadd.f32 0.0, %v1333
    %v1335 = vpop.f32.mrf.mxu0
    %v1336 = vadd.f32 0.0, %v1335
    %v1337 = vpop.f32.mrf.mxu0
    %v1338 = vpop.f32.mrf.mxu0
    %1339 = vdwg.mxu0
    %v1340 = vadd.f32 %v1078, %v1293
    %v1341 = vadd.f32 %v1079, %v1295
    %v1342 = vadd.f32 %v1080, %v1334
    %v1343 = vadd.f32 %v1081, %v1336
    %1344 = vmatprep.subr.bf16.mxu0 0
    %1345 = vmatpush1.bf16.msra.mxu0 0
    %1346 = vmatprep.subr.bf16.mxu0 0
    %1347 = vmatpush1.bf16.msra.mxu0 0
    %1348 = vmatprep.subr.bf16.mxu0 0
    %1349 = vmatpush1.bf16.msra.mxu0 0
    %1350 = vmatprep.subr.bf16.mxu0 0
    %1351 = vmatpush1.bf16.msra.mxu0 0
    %1352 = vmatprep.subr.bf16.mxu0 0
    %1353 = vmatpush1.bf16.msra.mxu0 0
    %1354 = vmatprep.subr.bf16.mxu0 0
    %1355 = vmatpush1.bf16.msra.mxu0 0
    %1356 = vmatprep.subr.bf16.mxu0 0
    %1357 = vmatpush1.bf16.msra.mxu0 0
    %1358 = vmatprep.subr.bf16.mxu0 %v449
    %1359 = vmatpush1.bf16.msra.mxu0 %v448
    %1360 = vmatprep.subr.bf16.mxu0 0
    %1361 = vmatpush2.bf16.msra.mxu0 0
    %1362 = vmatprep.subr.bf16.mxu0 0
    %1363 = vmatpush2.bf16.msra.mxu0 0
    %1364 = vmatprep.subr.bf16.mxu0 0
    %1365 = vmatpush2.bf16.msra.mxu0 0
    %1366 = vmatprep.subr.bf16.mxu0 0
    %1367 = vmatpush2.bf16.msra.mxu0 0
    %1368 = vmatprep.subr.bf16.mxu0 0
    %1369 = vmatpush2.bf16.msra.mxu0 0
    %1370 = vmatprep.subr.bf16.mxu0 0
    %1371 = vmatpush2.bf16.msra.mxu0 0
    %1372 = vmatprep.subr.bf16.mxu0 0
    %1373 = vmatpush2.bf16.msra.mxu0 0
    %1374 = vmatprep.subr.bf16.mxu0 0
    %1375 = vmatpush2.bf16.msra.mxu0 0
    %1376 = vmatprep.mubr.bf16.mxu0 0
    %1377 = vmatmul.mubr.bf16.gmra.mxu0 %v1256
    %v1378 = vpop.f32.mrf.mxu0
    %v1379 = vadd.f32 0.0, %v1378
    %v1380 = vpop.f32.mrf.mxu0
    %v1381 = vadd.f32 0.0, %v1380
    %v1382 = vpop.f32.mrf.mxu0
    %v1383 = vpop.f32.mrf.mxu0
    %1384 = vdwg.mxu0
    %1385 = vmatprep.subr.bf16.mxu0 0
    %1386 = vmatpush1.bf16.msra.mxu0 0
    %1387 = vmatprep.subr.bf16.mxu0 0
    %1388 = vmatpush1.bf16.msra.mxu0 0
    %1389 = vmatprep.subr.bf16.mxu0 0
    %1390 = vmatpush1.bf16.msra.mxu0 0
    %1391 = vmatprep.subr.bf16.mxu0 0
    %1392 = vmatpush1.bf16.msra.mxu0 0
    %1393 = vmatprep.subr.bf16.mxu0 0
    %1394 = vmatpush1.bf16.msra.mxu0 0
    %1395 = vmatprep.subr.bf16.mxu0 0
    %1396 = vmatpush1.bf16.msra.mxu0 0
    %1397 = vmatprep.subr.bf16.mxu0 0
    %1398 = vmatpush1.bf16.msra.mxu0 0
    %1399 = vmatprep.subr.bf16.mxu0 %v451
    %1400 = vmatpush1.bf16.msra.mxu0 %v450
    %1401 = vmatprep.subr.bf16.mxu0 0
    %1402 = vmatpush2.bf16.msra.mxu0 0
    %1403 = vmatprep.subr.bf16.mxu0 0
    %1404 = vmatpush2.bf16.msra.mxu0 0
    %1405 = vmatprep.subr.bf16.mxu0 0
    %1406 = vmatpush2.bf16.msra.mxu0 0
    %1407 = vmatprep.subr.bf16.mxu0 0
    %1408 = vmatpush2.bf16.msra.mxu0 0
    %1409 = vmatprep.subr.bf16.mxu0 0
    %1410 = vmatpush2.bf16.msra.mxu0 0
    %1411 = vmatprep.subr.bf16.mxu0 0
    %1412 = vmatpush2.bf16.msra.mxu0 0
    %1413 = vmatprep.subr.bf16.mxu0 0
    %1414 = vmatpush2.bf16.msra.mxu0 0
    %1415 = vmatprep.subr.bf16.mxu0 0
    %1416 = vmatpush2.bf16.msra.mxu0 0
    %1417 = vmatprep.mubr.bf16.mxu0 0
    %1418 = vmatmul.mubr.bf16.gmra.mxu0 %v1256
    %v1419 = vpop.f32.mrf.mxu0
    %v1420 = vadd.f32 0.0, %v1419
    %v1421 = vpop.f32.mrf.mxu0
    %v1422 = vadd.f32 0.0, %v1421
    %v1423 = vpop.f32.mrf.mxu0
    %v1424 = vpop.f32.mrf.mxu0
    %1425 = vdwg.mxu0
    %v1426 = vadd.f32 %v397, %v1379
    %v1427 = vxor.u32 %v1426, 2147483648
    %v1428 = vmul.f32 %v1427, 1.442695
    %v1429 = vpow.pop %v1428
    %v1430 = vadd.f32 %v1429, 1.0
    %v1431 = vrcp.pop %v1430
    %v1432 = vmul.f32 1.0, %v1431
    %1434 = vrot.lane.b32.xlu0 %v1381, 16
    %v1435 = vpop.permute.xlu0 %1434
    %v1437 = vadd.f32 %v397, %v1435
    %v1438 = vxor.u32 %v1437, 2147483648
    %v1439 = vmul.f32 %v1438, 1.442695
    %v1440 = vpow.pop %v1439
    %v1441 = vadd.f32 %v1440, 1.0
    %v1442 = vrcp.pop %v1441
    %v1443 = vmul.f32 1.0, %v1442
    %1445 = vrot.lane.b32.xlu0 %v1420, 32
    %v1446 = vpop.permute.xlu0 %1445
    %v1448 = vadd.f32 %v397, %v1446
    %v1449 = vtanh.pop %v1448
    %1451 = vrot.lane.b32.xlu0 %v1422, 48
    %v1452 = vpop.permute.xlu0 %1451
    %v1454 = vadd.f32 %v397, %v1452
    %v1455 = vxor.u32 %v1454, 2147483648
    %v1456 = vmul.f32 %v1455, 1.442695
    %v1457 = vpow.pop %v1456
    %v1458 = vadd.f32 %v1457, 1.0
    %v1459 = vrcp.pop %v1458
    %v1460 = vmul.f32 1.0, %v1459
    %v1462 = vrot.slane %v1218, 6
    %v1464 = vmul.f32 %v1443, %v1462
    %1466 = vrot.lane.b32.xlu0 %v1449, 96
    %v1467 = vpop.permute.xlu0 %1466
    %v1469 = vmul.f32 %v1432, %v1467
    %1471 = vrot.lane.b32.xlu0 %v1469, 16
    %v1472 = vpop.permute.xlu0 %1471
    %v1474 = vadd.f32 %v1464, %v1472
    %v1475 = vtanh.pop %v1474
    %1477 = vrot.lane.b32.xlu0 %v1475, 32
    %v1478 = vpop.permute.xlu0 %1477
    %v1480 = vmul.f32 %v1460, %v1478
    %v1481 = vpack.c.bf16 %v1480, %v1480
    %s1482 = scalar_lea.vmem %s4, 128
    %v1483 = vld [vmem:[%s1482] sm:$0xff]
    %v1484 = vld [vmem:[%s1482 + $0x8] sm:$0xff]
    %v1485 = vld [vmem:[%s1482 + $0x10] sm:$0xff]
    %v1486 = vld [vmem:[%s1482 + $0x18] sm:$0xff]
    %1488 = vrot.lane.b32.xlu0 %v1481, 80
    %v1489 = vpop.permute.xlu0 %1488
    %v1494 = vunpack.c.l.b16 %v1483
    %v1495 = vunpack.c.h.b16 %v1483
    %v1496 = vunpack.c.l.b16 %v1484
    %v1497 = vunpack.c.h.b16 %v1484
    %v1498 = vunpack.c.l.b16 %v1485
    %v1499 = vunpack.c.h.b16 %v1485
    %v1500 = vunpack.c.l.b16 %v1486
    %v1501 = vunpack.c.h.b16 %v1486
    %v1502 = vpack.c.b16 %v1498, %v1494
    %v1503 = vpack.c.b16 %v1499, %v1495
    %v1504 = vpack.c.b16 %v1500, %v1496
    %v1505 = vpack.c.b16 %v1501, %v1497
    %v1511 = vsel %vm456, %v1489, 0
    %1513 = vmatprep.subr.bf16.mxu0 0
    %1514 = vmatpush1.bf16.msra.mxu0 0
    %1515 = vmatprep.subr.bf16.mxu0 0
    %1516 = vmatpush1.bf16.msra.mxu0 0
    %1517 = vmatprep.subr.bf16.mxu0 0
    %1518 = vmatpush1.bf16.msra.mxu0 0
    %1519 = vmatprep.subr.bf16.mxu0 0
    %1520 = vmatpush1.bf16.msra.mxu0 0
    %1521 = vmatprep.subr.bf16.mxu0 0
    %1522 = vmatpush1.bf16.msra.mxu0 0
    %1523 = vmatprep.subr.bf16.mxu0 0
    %1524 = vmatpush1.bf16.msra.mxu0 0
    %1525 = vmatprep.subr.bf16.mxu0 0
    %1526 = vmatpush1.bf16.msra.mxu0 0
    %1527 = vmatprep.subr.bf16.mxu0 %v1503
    %1528 = vmatpush1.bf16.msra.mxu0 %v1502
    %1529 = vmatprep.subr.bf16.mxu0 0
    %1530 = vmatpush2.bf16.msra.mxu0 0
    %1531 = vmatprep.subr.bf16.mxu0 0
    %1532 = vmatpush2.bf16.msra.mxu0 0
    %1533 = vmatprep.subr.bf16.mxu0 0
    %1534 = vmatpush2.bf16.msra.mxu0 0
    %1535 = vmatprep.subr.bf16.mxu0 0
    %1536 = vmatpush2.bf16.msra.mxu0 0
    %1537 = vmatprep.subr.bf16.mxu0 0
    %1538 = vmatpush2.bf16.msra.mxu0 0
    %1539 = vmatprep.subr.bf16.mxu0 0
    %1540 = vmatpush2.bf16.msra.mxu0 0
    %1541 = vmatprep.subr.bf16.mxu0 0
    %1542 = vmatpush2.bf16.msra.mxu0 0
    %1543 = vmatprep.subr.bf16.mxu0 0
    %1544 = vmatpush2.bf16.msra.mxu0 0
    %1545 = vmatprep.mubr.bf16.mxu0 0
    %1546 = vmatmul.mubr.bf16.gmra.mxu0 %v1511
    %v1547 = vpop.f32.mrf.mxu0
    %v1548 = vadd.f32 0.0, %v1547
    %v1549 = vpop.f32.mrf.mxu0
    %v1550 = vadd.f32 0.0, %v1549
    %v1551 = vpop.f32.mrf.mxu0
    %v1552 = vpop.f32.mrf.mxu0
    %1553 = vdwg.mxu0
    %1554 = vmatprep.subr.bf16.mxu0 0
    %1555 = vmatpush1.bf16.msra.mxu0 0
    %1556 = vmatprep.subr.bf16.mxu0 0
    %1557 = vmatpush1.bf16.msra.mxu0 0
    %1558 = vmatprep.subr.bf16.mxu0 0
    %1559 = vmatpush1.bf16.msra.mxu0 0
    %1560 = vmatprep.subr.bf16.mxu0 0
    %1561 = vmatpush1.bf16.msra.mxu0 0
    %1562 = vmatprep.subr.bf16.mxu0 0
    %1563 = vmatpush1.bf16.msra.mxu0 0
    %1564 = vmatprep.subr.bf16.mxu0 0
    %1565 = vmatpush1.bf16.msra.mxu0 0
    %1566 = vmatprep.subr.bf16.mxu0 0
    %1567 = vmatpush1.bf16.msra.mxu0 0
    %1568 = vmatprep.subr.bf16.mxu0 %v1505
    %1569 = vmatpush1.bf16.msra.mxu0 %v1504
    %1570 = vmatprep.subr.bf16.mxu0 0
    %1571 = vmatpush2.bf16.msra.mxu0 0
    %1572 = vmatprep.subr.bf16.mxu0 0
    %1573 = vmatpush2.bf16.msra.mxu0 0
    %1574 = vmatprep.subr.bf16.mxu0 0
    %1575 = vmatpush2.bf16.msra.mxu0 0
    %1576 = vmatprep.subr.bf16.mxu0 0
    %1577 = vmatpush2.bf16.msra.mxu0 0
    %1578 = vmatprep.subr.bf16.mxu0 0
    %1579 = vmatpush2.bf16.msra.mxu0 0
    %1580 = vmatprep.subr.bf16.mxu0 0
    %1581 = vmatpush2.bf16.msra.mxu0 0
    %1582 = vmatprep.subr.bf16.mxu0 0
    %1583 = vmatpush2.bf16.msra.mxu0 0
    %1584 = vmatprep.subr.bf16.mxu0 0
    %1585 = vmatpush2.bf16.msra.mxu0 0
    %1586 = vmatprep.mubr.bf16.mxu0 0
    %1587 = vmatmul.mubr.bf16.gmra.mxu0 %v1511
    %v1588 = vpop.f32.mrf.mxu0
    %v1589 = vadd.f32 0.0, %v1588
    %v1590 = vpop.f32.mrf.mxu0
    %v1591 = vadd.f32 0.0, %v1590
    %v1592 = vpop.f32.mrf.mxu0
    %v1593 = vpop.f32.mrf.mxu0
    %1594 = vdwg.mxu0
    %v1595 = vadd.f32 %v1340, %v1548
    %v1596 = vadd.f32 %v1341, %v1550
    %v1597 = vadd.f32 %v1342, %v1589
    %v1598 = vadd.f32 %v1343, %v1591
    %1599 = vmatprep.subr.bf16.mxu0 0
    %1600 = vmatpush1.bf16.msra.mxu0 0
    %1601 = vmatprep.subr.bf16.mxu0 0
    %1602 = vmatpush1.bf16.msra.mxu0 0
    %1603 = vmatprep.subr.bf16.mxu0 0
    %1604 = vmatpush1.bf16.msra.mxu0 0
    %1605 = vmatprep.subr.bf16.mxu0 0
    %1606 = vmatpush1.bf16.msra.mxu0 0
    %1607 = vmatprep.subr.bf16.mxu0 0
    %1608 = vmatpush1.bf16.msra.mxu0 0
    %1609 = vmatprep.subr.bf16.mxu0 0
    %1610 = vmatpush1.bf16.msra.mxu0 0
    %1611 = vmatprep.subr.bf16.mxu0 0
    %1612 = vmatpush1.bf16.msra.mxu0 0
    %1613 = vmatprep.subr.bf16.mxu0 %v449
    %1614 = vmatpush1.bf16.msra.mxu0 %v448
    %1615 = vmatprep.subr.bf16.mxu0 0
    %1616 = vmatpush2.bf16.msra.mxu0 0
    %1617 = vmatprep.subr.bf16.mxu0 0
    %1618 = vmatpush2.bf16.msra.mxu0 0
    %1619 = vmatprep.subr.bf16.mxu0 0
    %1620 = vmatpush2.bf16.msra.mxu0 0
    %1621 = vmatprep.subr.bf16.mxu0 0
    %1622 = vmatpush2.bf16.msra.mxu0 0
    %1623 = vmatprep.subr.bf16.mxu0 0
    %1624 = vmatpush2.bf16.msra.mxu0 0
    %1625 = vmatprep.subr.bf16.mxu0 0
    %1626 = vmatpush2.bf16.msra.mxu0 0
    %1627 = vmatprep.subr.bf16.mxu0 0
    %1628 = vmatpush2.bf16.msra.mxu0 0
    %1629 = vmatprep.subr.bf16.mxu0 0
    %1630 = vmatpush2.bf16.msra.mxu0 0
    %1631 = vmatprep.mubr.bf16.mxu0 0
    %1632 = vmatmul.mubr.bf16.gmra.mxu0 %v1511
    %v1633 = vpop.f32.mrf.mxu0
    %v1634 = vadd.f32 0.0, %v1633
    %v1635 = vpop.f32.mrf.mxu0
    %v1636 = vadd.f32 0.0, %v1635
    %v1637 = vpop.f32.mrf.mxu0
    %v1638 = vpop.f32.mrf.mxu0
    %1639 = vdwg.mxu0
    %1640 = vmatprep.subr.bf16.mxu0 0
    %1641 = vmatpush1.bf16.msra.mxu0 0
    %1642 = vmatprep.subr.bf16.mxu0 0
    %1643 = vmatpush1.bf16.msra.mxu0 0
    %1644 = vmatprep.subr.bf16.mxu0 0
    %1645 = vmatpush1.bf16.msra.mxu0 0
    %1646 = vmatprep.subr.bf16.mxu0 0
    %1647 = vmatpush1.bf16.msra.mxu0 0
    %1648 = vmatprep.subr.bf16.mxu0 0
    %1649 = vmatpush1.bf16.msra.mxu0 0
    %1650 = vmatprep.subr.bf16.mxu0 0
    %1651 = vmatpush1.bf16.msra.mxu0 0
    %1652 = vmatprep.subr.bf16.mxu0 0
    %1653 = vmatpush1.bf16.msra.mxu0 0
    %1654 = vmatprep.subr.bf16.mxu0 %v451
    %1655 = vmatpush1.bf16.msra.mxu0 %v450
    %1656 = vmatprep.subr.bf16.mxu0 0
    %1657 = vmatpush2.bf16.msra.mxu0 0
    %1658 = vmatprep.subr.bf16.mxu0 0
    %1659 = vmatpush2.bf16.msra.mxu0 0
    %1660 = vmatprep.subr.bf16.mxu0 0
    %1661 = vmatpush2.bf16.msra.mxu0 0
    %1662 = vmatprep.subr.bf16.mxu0 0
    %1663 = vmatpush2.bf16.msra.mxu0 0
    %1664 = vmatprep.subr.bf16.mxu0 0
    %1665 = vmatpush2.bf16.msra.mxu0 0
    %1666 = vmatprep.subr.bf16.mxu0 0
    %1667 = vmatpush2.bf16.msra.mxu0 0
    %1668 = vmatprep.subr.bf16.mxu0 0
    %1669 = vmatpush2.bf16.msra.mxu0 0
    %1670 = vmatprep.subr.bf16.mxu0 0
    %1671 = vmatpush2.bf16.msra.mxu0 0
    %1672 = vmatprep.mubr.bf16.mxu0 0
    %1673 = vmatmul.mubr.bf16.gmra.mxu0 %v1511
    %v1674 = vpop.f32.mrf.mxu0
    %v1675 = vadd.f32 0.0, %v1674
    %v1676 = vpop.f32.mrf.mxu0
    %v1677 = vadd.f32 0.0, %v1676
    %v1678 = vpop.f32.mrf.mxu0
    %v1679 = vpop.f32.mrf.mxu0
    %1680 = vdwg.mxu0
    %v1682 = vrot.slane %v1634, 6
    %v1684 = vadd.f32 %v397, %v1682
    %v1685 = vxor.u32 %v1684, 2147483648
    %v1686 = vmul.f32 %v1685, 1.442695
    %v1687 = vpow.pop %v1686
    %v1688 = vadd.f32 %v1687, 1.0
    %v1689 = vrcp.pop %v1688
    %v1690 = vmul.f32 1.0, %v1689
    %v1692 = vrot.slane %v1636, 6
    %1693 = vrot.lane.b32.xlu0 %v1692, 16
    %v1694 = vpop.permute.xlu0 %1693
    %v1696 = vadd.f32 %v397, %v1694
    %v1697 = vxor.u32 %v1696, 2147483648
    %v1698 = vmul.f32 %v1697, 1.442695
    %v1699 = vpow.pop %v1698
    %v1700 = vadd.f32 %v1699, 1.0
    %v1701 = vrcp.pop %v1700
    %v1702 = vmul.f32 1.0, %v1701
    %v1704 = vrot.slane %v1675, 6
    %1705 = vrot.lane.b32.xlu0 %v1704, 32
    %v1706 = vpop.permute.xlu0 %1705
    %v1708 = vadd.f32 %v397, %v1706
    %v1709 = vtanh.pop %v1708
    %v1711 = vrot.slane %v1677, 6
    %1712 = vrot.lane.b32.xlu0 %v1711, 48
    %v1713 = vpop.permute.xlu0 %1712
    %v1715 = vadd.f32 %v397, %v1713
    %v1716 = vxor.u32 %v1715, 2147483648
    %v1717 = vmul.f32 %v1716, 1.442695
    %v1718 = vpow.pop %v1717
    %v1719 = vadd.f32 %v1718, 1.0
    %v1720 = vrcp.pop %v1719
    %v1721 = vmul.f32 1.0, %v1720
    %v1723 = vrot.slane %v1474, 6
    %v1725 = vmul.f32 %v1702, %v1723
    %1727 = vrot.lane.b32.xlu0 %v1709, 96
    %v1728 = vpop.permute.xlu0 %1727
    %v1730 = vmul.f32 %v1690, %v1728
    %1732 = vrot.lane.b32.xlu0 %v1730, 16
    %v1733 = vpop.permute.xlu0 %1732
    %v1735 = vadd.f32 %v1725, %v1733
    %v1736 = vtanh.pop %v1735
    %1738 = vrot.lane.b32.xlu0 %v1736, 32
    %v1739 = vpop.permute.xlu0 %1738
    %v1741 = vmul.f32 %v1721, %v1739
    %v1742 = vpack.c.bf16 %v1741, %v1741
    %s1743 = scalar_lea.vmem %s4, 160
    %v1744 = vld [vmem:[%s1743] sm:$0xff]
    %v1745 = vld [vmem:[%s1743 + $0x8] sm:$0xff]
    %v1746 = vld [vmem:[%s1743 + $0x10] sm:$0xff]
    %v1747 = vld [vmem:[%s1743 + $0x18] sm:$0xff]
    %v1749 = vrot.slane %v1742, 1
    %1750 = vrot.lane.b32.xlu0 %v1749, 80
    %v1751 = vpop.permute.xlu0 %1750
    %v1756 = vunpack.c.l.b16 %v1744
    %v1757 = vunpack.c.h.b16 %v1744
    %v1758 = vunpack.c.l.b16 %v1745
    %v1759 = vunpack.c.h.b16 %v1745
    %v1760 = vunpack.c.l.b16 %v1746
    %v1761 = vunpack.c.h.b16 %v1746
    %v1762 = vunpack.c.l.b16 %v1747
    %v1763 = vunpack.c.h.b16 %v1747
    %v1764 = vpack.c.b16 %v1760, %v1756
    %v1765 = vpack.c.b16 %v1761, %v1757
    %v1766 = vpack.c.b16 %v1762, %v1758
    %v1767 = vpack.c.b16 %v1763, %v1759
    %v1773 = vsel %vm456, %v1751, 0
    %1775 = vmatprep.subr.bf16.mxu0 0
    %1776 = vmatpush1.bf16.msra.mxu0 0
    %1777 = vmatprep.subr.bf16.mxu0 0
    %1778 = vmatpush1.bf16.msra.mxu0 0
    %1779 = vmatprep.subr.bf16.mxu0 0
    %1780 = vmatpush1.bf16.msra.mxu0 0
    %1781 = vmatprep.subr.bf16.mxu0 0
    %1782 = vmatpush1.bf16.msra.mxu0 0
    %1783 = vmatprep.subr.bf16.mxu0 0
    %1784 = vmatpush1.bf16.msra.mxu0 0
    %1785 = vmatprep.subr.bf16.mxu0 0
    %1786 = vmatpush1.bf16.msra.mxu0 0
    %1787 = vmatprep.subr.bf16.mxu0 0
    %1788 = vmatpush1.bf16.msra.mxu0 0
    %1789 = vmatprep.subr.bf16.mxu0 %v1765
    %1790 = vmatpush1.bf16.msra.mxu0 %v1764
    %1791 = vmatprep.subr.bf16.mxu0 0
    %1792 = vmatpush2.bf16.msra.mxu0 0
    %1793 = vmatprep.subr.bf16.mxu0 0
    %1794 = vmatpush2.bf16.msra.mxu0 0
    %1795 = vmatprep.subr.bf16.mxu0 0
    %1796 = vmatpush2.bf16.msra.mxu0 0
    %1797 = vmatprep.subr.bf16.mxu0 0
    %1798 = vmatpush2.bf16.msra.mxu0 0
    %1799 = vmatprep.subr.bf16.mxu0 0
    %1800 = vmatpush2.bf16.msra.mxu0 0
    %1801 = vmatprep.subr.bf16.mxu0 0
    %1802 = vmatpush2.bf16.msra.mxu0 0
    %1803 = vmatprep.subr.bf16.mxu0 0
    %1804 = vmatpush2.bf16.msra.mxu0 0
    %1805 = vmatprep.subr.bf16.mxu0 0
    %1806 = vmatpush2.bf16.msra.mxu0 0
    %1807 = vmatprep.mubr.bf16.mxu0 0
    %1808 = vmatmul.mubr.bf16.gmra.mxu0 %v1773
    %v1809 = vpop.f32.mrf.mxu0
    %v1810 = vadd.f32 0.0, %v1809
    %v1811 = vpop.f32.mrf.mxu0
    %v1812 = vadd.f32 0.0, %v1811
    %v1813 = vpop.f32.mrf.mxu0
    %v1814 = vpop.f32.mrf.mxu0
    %1815 = vdwg.mxu0
    %1816 = vmatprep.subr.bf16.mxu0 0
    %1817 = vmatpush1.bf16.msra.mxu0 0
    %1818 = vmatprep.subr.bf16.mxu0 0
    %1819 = vmatpush1.bf16.msra.mxu0 0
    %1820 = vmatprep.subr.bf16.mxu0 0
    %1821 = vmatpush1.bf16.msra.mxu0 0
    %1822 = vmatprep.subr.bf16.mxu0 0
    %1823 = vmatpush1.bf16.msra.mxu0 0
    %1824 = vmatprep.subr.bf16.mxu0 0
    %1825 = vmatpush1.bf16.msra.mxu0 0
    %1826 = vmatprep.subr.bf16.mxu0 0
    %1827 = vmatpush1.bf16.msra.mxu0 0
    %1828 = vmatprep.subr.bf16.mxu0 0
    %1829 = vmatpush1.bf16.msra.mxu0 0
    %1830 = vmatprep.subr.bf16.mxu0 %v1767
    %1831 = vmatpush1.bf16.msra.mxu0 %v1766
    %1832 = vmatprep.subr.bf16.mxu0 0
    %1833 = vmatpush2.bf16.msra.mxu0 0
    %1834 = vmatprep.subr.bf16.mxu0 0
    %1835 = vmatpush2.bf16.msra.mxu0 0
    %1836 = vmatprep.subr.bf16.mxu0 0
    %1837 = vmatpush2.bf16.msra.mxu0 0
    %1838 = vmatprep.subr.bf16.mxu0 0
    %1839 = vmatpush2.bf16.msra.mxu0 0
    %1840 = vmatprep.subr.bf16.mxu0 0
    %1841 = vmatpush2.bf16.msra.mxu0 0
    %1842 = vmatprep.subr.bf16.mxu0 0
    %1843 = vmatpush2.bf16.msra.mxu0 0
    %1844 = vmatprep.subr.bf16.mxu0 0
    %1845 = vmatpush2.bf16.msra.mxu0 0
    %1846 = vmatprep.subr.bf16.mxu0 0
    %1847 = vmatpush2.bf16.msra.mxu0 0
    %1848 = vmatprep.mubr.bf16.mxu0 0
    %1849 = vmatmul.mubr.bf16.gmra.mxu0 %v1773
    %v1850 = vpop.f32.mrf.mxu0
    %v1851 = vadd.f32 0.0, %v1850
    %v1852 = vpop.f32.mrf.mxu0
    %v1853 = vadd.f32 0.0, %v1852
    %v1854 = vpop.f32.mrf.mxu0
    %v1855 = vpop.f32.mrf.mxu0
    %1856 = vdwg.mxu0
    %v1857 = vadd.f32 %v1595, %v1810
    %v1858 = vadd.f32 %v1596, %v1812
    %v1859 = vadd.f32 %v1597, %v1851
    %v1860 = vadd.f32 %v1598, %v1853
    %1861 = vmatprep.subr.bf16.mxu0 0
    %1862 = vmatpush1.bf16.msra.mxu0 0
    %1863 = vmatprep.subr.bf16.mxu0 0
    %1864 = vmatpush1.bf16.msra.mxu0 0
    %1865 = vmatprep.subr.bf16.mxu0 0
    %1866 = vmatpush1.bf16.msra.mxu0 0
    %1867 = vmatprep.subr.bf16.mxu0 0
    %1868 = vmatpush1.bf16.msra.mxu0 0
    %1869 = vmatprep.subr.bf16.mxu0 0
    %1870 = vmatpush1.bf16.msra.mxu0 0
    %1871 = vmatprep.subr.bf16.mxu0 0
    %1872 = vmatpush1.bf16.msra.mxu0 0
    %1873 = vmatprep.subr.bf16.mxu0 0
    %1874 = vmatpush1.bf16.msra.mxu0 0
    %1875 = vmatprep.subr.bf16.mxu0 %v449
    %1876 = vmatpush1.bf16.msra.mxu0 %v448
    %1877 = vmatprep.subr.bf16.mxu0 0
    %1878 = vmatpush2.bf16.msra.mxu0 0
    %1879 = vmatprep.subr.bf16.mxu0 0
    %1880 = vmatpush2.bf16.msra.mxu0 0
    %1881 = vmatprep.subr.bf16.mxu0 0
    %1882 = vmatpush2.bf16.msra.mxu0 0
    %1883 = vmatprep.subr.bf16.mxu0 0
    %1884 = vmatpush2.bf16.msra.mxu0 0
    %1885 = vmatprep.subr.bf16.mxu0 0
    %1886 = vmatpush2.bf16.msra.mxu0 0
    %1887 = vmatprep.subr.bf16.mxu0 0
    %1888 = vmatpush2.bf16.msra.mxu0 0
    %1889 = vmatprep.subr.bf16.mxu0 0
    %1890 = vmatpush2.bf16.msra.mxu0 0
    %1891 = vmatprep.subr.bf16.mxu0 0
    %1892 = vmatpush2.bf16.msra.mxu0 0
    %1893 = vmatprep.mubr.bf16.mxu0 0
    %1894 = vmatmul.mubr.bf16.gmra.mxu0 %v1773
    %v1895 = vpop.f32.mrf.mxu0
    %v1896 = vadd.f32 0.0, %v1895
    %v1897 = vpop.f32.mrf.mxu0
    %v1898 = vadd.f32 0.0, %v1897
    %v1899 = vpop.f32.mrf.mxu0
    %v1900 = vpop.f32.mrf.mxu0
    %1901 = vdwg.mxu0
    %1902 = vmatprep.subr.bf16.mxu0 0
    %1903 = vmatpush1.bf16.msra.mxu0 0
    %1904 = vmatprep.subr.bf16.mxu0 0
    %1905 = vmatpush1.bf16.msra.mxu0 0
    %1906 = vmatprep.subr.bf16.mxu0 0
    %1907 = vmatpush1.bf16.msra.mxu0 0
    %1908 = vmatprep.subr.bf16.mxu0 0
    %1909 = vmatpush1.bf16.msra.mxu0 0
    %1910 = vmatprep.subr.bf16.mxu0 0
    %1911 = vmatpush1.bf16.msra.mxu0 0
    %1912 = vmatprep.subr.bf16.mxu0 0
    %1913 = vmatpush1.bf16.msra.mxu0 0
    %1914 = vmatprep.subr.bf16.mxu0 0
    %1915 = vmatpush1.bf16.msra.mxu0 0
    %1916 = vmatprep.subr.bf16.mxu0 %v451
    %1917 = vmatpush1.bf16.msra.mxu0 %v450
    %1918 = vmatprep.subr.bf16.mxu0 0
    %1919 = vmatpush2.bf16.msra.mxu0 0
    %1920 = vmatprep.subr.bf16.mxu0 0
    %1921 = vmatpush2.bf16.msra.mxu0 0
    %1922 = vmatprep.subr.bf16.mxu0 0
    %1923 = vmatpush2.bf16.msra.mxu0 0
    %1924 = vmatprep.subr.bf16.mxu0 0
    %1925 = vmatpush2.bf16.msra.mxu0 0
    %1926 = vmatprep.subr.bf16.mxu0 0
    %1927 = vmatpush2.bf16.msra.mxu0 0
    %1928 = vmatprep.subr.bf16.mxu0 0
    %1929 = vmatpush2.bf16.msra.mxu0 0
    %1930 = vmatprep.subr.bf16.mxu0 0
    %1931 = vmatpush2.bf16.msra.mxu0 0
    %1932 = vmatprep.subr.bf16.mxu0 0
    %1933 = vmatpush2.bf16.msra.mxu0 0
    %1934 = vmatprep.mubr.bf16.mxu0 0
    %1935 = vmatmul.mubr.bf16.gmra.mxu0 %v1773
    %v1936 = vpop.f32.mrf.mxu0
    %v1937 = vadd.f32 0.0, %v1936
    %v1938 = vpop.f32.mrf.mxu0
    %v1939 = vadd.f32 0.0, %v1938
    %v1940 = vpop.f32.mrf.mxu0
    %v1941 = vpop.f32.mrf.mxu0
    %1942 = vdwg.mxu0
    %v1944 = vrot.slane %v1896, 4
    %v1946 = vadd.f32 %v397, %v1944
    %v1947 = vxor.u32 %v1946, 2147483648
    %v1948 = vmul.f32 %v1947, 1.442695
    %v1949 = vpow.pop %v1948
    %v1950 = vadd.f32 %v1949, 1.0
    %v1951 = vrcp.pop %v1950
    %v1952 = vmul.f32 1.0, %v1951
    %v1954 = vrot.slane %v1898, 4
    %1955 = vrot.lane.b32.xlu0 %v1954, 16
    %v1956 = vpop.permute.xlu0 %1955
    %v1958 = vadd.f32 %v397, %v1956
    %v1959 = vxor.u32 %v1958, 2147483648
    %v1960 = vmul.f32 %v1959, 1.442695
    %v1961 = vpow.pop %v1960
    %v1962 = vadd.f32 %v1961, 1.0
    %v1963 = vrcp.pop %v1962
    %v1964 = vmul.f32 1.0, %v1963
    %v1966 = vrot.slane %v1937, 4
    %1967 = vrot.lane.b32.xlu0 %v1966, 32
    %v1968 = vpop.permute.xlu0 %1967
    %v1970 = vadd.f32 %v397, %v1968
    %v1971 = vtanh.pop %v1970
    %v1973 = vrot.slane %v1939, 4
    %1974 = vrot.lane.b32.xlu0 %v1973, 48
    %v1975 = vpop.permute.xlu0 %1974
    %v1977 = vadd.f32 %v397, %v1975
    %v1978 = vxor.u32 %v1977, 2147483648
    %v1979 = vmul.f32 %v1978, 1.442695
    %v1980 = vpow.pop %v1979
    %v1981 = vadd.f32 %v1980, 1.0
    %v1982 = vrcp.pop %v1981
    %v1983 = vmul.f32 1.0, %v1982
    %v1985 = vrot.slane %v1735, 6
    %v1987 = vmul.f32 %v1964, %v1985
    %1989 = vrot.lane.b32.xlu0 %v1971, 96
    %v1990 = vpop.permute.xlu0 %1989
    %v1992 = vmul.f32 %v1952, %v1990
    %1994 = vrot.lane.b32.xlu0 %v1992, 16
    %v1995 = vpop.permute.xlu0 %1994
    %v1997 = vadd.f32 %v1987, %v1995
    %v1998 = vtanh.pop %v1997
    %2000 = vrot.lane.b32.xlu0 %v1998, 32
    %v2001 = vpop.permute.xlu0 %2000
    %v2003 = vmul.f32 %v1983, %v2001
    %v2004 = vpack.c.bf16 %v2003, %v2003
    %s2005 = scalar_lea.vmem %s4, 192
    %v2006 = vld [vmem:[%s2005] sm:$0xff]
    %v2007 = vld [vmem:[%s2005 + $0x8] sm:$0xff]
    %v2008 = vld [vmem:[%s2005 + $0x10] sm:$0xff]
    %v2009 = vld [vmem:[%s2005 + $0x18] sm:$0xff]
    %v2011 = vrot.slane %v2004, 2
    %2012 = vrot.lane.b32.xlu0 %v2011, 80
    %v2013 = vpop.permute.xlu0 %2012
    %v2018 = vunpack.c.l.b16 %v2006
    %v2019 = vunpack.c.h.b16 %v2006
    %v2020 = vunpack.c.l.b16 %v2007
    %v2021 = vunpack.c.h.b16 %v2007
    %v2022 = vunpack.c.l.b16 %v2008
    %v2023 = vunpack.c.h.b16 %v2008
    %v2024 = vunpack.c.l.b16 %v2009
    %v2025 = vunpack.c.h.b16 %v2009
    %v2026 = vpack.c.b16 %v2022, %v2018
    %v2027 = vpack.c.b16 %v2023, %v2019
    %v2028 = vpack.c.b16 %v2024, %v2020
    %v2029 = vpack.c.b16 %v2025, %v2021
    %v2035 = vsel %vm456, %v2013, 0
    %2037 = vmatprep.subr.bf16.mxu0 0
    %2038 = vmatpush1.bf16.msra.mxu0 0
    %2039 = vmatprep.subr.bf16.mxu0 0
    %2040 = vmatpush1.bf16.msra.mxu0 0
    %2041 = vmatprep.subr.bf16.mxu0 0
    %2042 = vmatpush1.bf16.msra.mxu0 0
    %2043 = vmatprep.subr.bf16.mxu0 0
    %2044 = vmatpush1.bf16.msra.mxu0 0
    %2045 = vmatprep.subr.bf16.mxu0 0
    %2046 = vmatpush1.bf16.msra.mxu0 0
    %2047 = vmatprep.subr.bf16.mxu0 0
    %2048 = vmatpush1.bf16.msra.mxu0 0
    %2049 = vmatprep.subr.bf16.mxu0 0
    %2050 = vmatpush1.bf16.msra.mxu0 0
    %2051 = vmatprep.subr.bf16.mxu0 %v2027
    %2052 = vmatpush1.bf16.msra.mxu0 %v2026
    %2053 = vmatprep.subr.bf16.mxu0 0
    %2054 = vmatpush2.bf16.msra.mxu0 0
    %2055 = vmatprep.subr.bf16.mxu0 0
    %2056 = vmatpush2.bf16.msra.mxu0 0
    %2057 = vmatprep.subr.bf16.mxu0 0
    %2058 = vmatpush2.bf16.msra.mxu0 0
    %2059 = vmatprep.subr.bf16.mxu0 0
    %2060 = vmatpush2.bf16.msra.mxu0 0
    %2061 = vmatprep.subr.bf16.mxu0 0
    %2062 = vmatpush2.bf16.msra.mxu0 0
    %2063 = vmatprep.subr.bf16.mxu0 0
    %2064 = vmatpush2.bf16.msra.mxu0 0
    %2065 = vmatprep.subr.bf16.mxu0 0
    %2066 = vmatpush2.bf16.msra.mxu0 0
    %2067 = vmatprep.subr.bf16.mxu0 0
    %2068 = vmatpush2.bf16.msra.mxu0 0
    %2069 = vmatprep.mubr.bf16.mxu0 0
    %2070 = vmatmul.mubr.bf16.gmra.mxu0 %v2035
    %v2071 = vpop.f32.mrf.mxu0
    %v2072 = vadd.f32 0.0, %v2071
    %v2073 = vpop.f32.mrf.mxu0
    %v2074 = vadd.f32 0.0, %v2073
    %v2075 = vpop.f32.mrf.mxu0
    %v2076 = vpop.f32.mrf.mxu0
    %2077 = vdwg.mxu0
    %2078 = vmatprep.subr.bf16.mxu0 0
    %2079 = vmatpush1.bf16.msra.mxu0 0
    %2080 = vmatprep.subr.bf16.mxu0 0
    %2081 = vmatpush1.bf16.msra.mxu0 0
    %2082 = vmatprep.subr.bf16.mxu0 0
    %2083 = vmatpush1.bf16.msra.mxu0 0
    %2084 = vmatprep.subr.bf16.mxu0 0
    %2085 = vmatpush1.bf16.msra.mxu0 0
    %2086 = vmatprep.subr.bf16.mxu0 0
    %2087 = vmatpush1.bf16.msra.mxu0 0
    %2088 = vmatprep.subr.bf16.mxu0 0
    %2089 = vmatpush1.bf16.msra.mxu0 0
    %2090 = vmatprep.subr.bf16.mxu0 0
    %2091 = vmatpush1.bf16.msra.mxu0 0
    %2092 = vmatprep.subr.bf16.mxu0 %v2029
    %2093 = vmatpush1.bf16.msra.mxu0 %v2028
    %2094 = vmatprep.subr.bf16.mxu0 0
    %2095 = vmatpush2.bf16.msra.mxu0 0
    %2096 = vmatprep.subr.bf16.mxu0 0
    %2097 = vmatpush2.bf16.msra.mxu0 0
    %2098 = vmatprep.subr.bf16.mxu0 0
    %2099 = vmatpush2.bf16.msra.mxu0 0
    %2100 = vmatprep.subr.bf16.mxu0 0
    %2101 = vmatpush2.bf16.msra.mxu0 0
    %2102 = vmatprep.subr.bf16.mxu0 0
    %2103 = vmatpush2.bf16.msra.mxu0 0
    %2104 = vmatprep.subr.bf16.mxu0 0
    %2105 = vmatpush2.bf16.msra.mxu0 0
    %2106 = vmatprep.subr.bf16.mxu0 0
    %2107 = vmatpush2.bf16.msra.mxu0 0
    %2108 = vmatprep.subr.bf16.mxu0 0
    %2109 = vmatpush2.bf16.msra.mxu0 0
    %2110 = vmatprep.mubr.bf16.mxu0 0
    %2111 = vmatmul.mubr.bf16.gmra.mxu0 %v2035
    %v2112 = vpop.f32.mrf.mxu0
    %v2113 = vadd.f32 0.0, %v2112
    %v2114 = vpop.f32.mrf.mxu0
    %v2115 = vadd.f32 0.0, %v2114
    %v2116 = vpop.f32.mrf.mxu0
    %v2117 = vpop.f32.mrf.mxu0
    %2118 = vdwg.mxu0
    %v2119 = vadd.f32 %v1857, %v2072
    %v2120 = vadd.f32 %v1858, %v2074
    %v2121 = vadd.f32 %v1859, %v2113
    %v2122 = vadd.f32 %v1860, %v2115
    %2123 = vmatprep.subr.bf16.mxu0 0
    %2124 = vmatpush1.bf16.msra.mxu0 0
    %2125 = vmatprep.subr.bf16.mxu0 0
    %2126 = vmatpush1.bf16.msra.mxu0 0
    %2127 = vmatprep.subr.bf16.mxu0 0
    %2128 = vmatpush1.bf16.msra.mxu0 0
    %2129 = vmatprep.subr.bf16.mxu0 0
    %2130 = vmatpush1.bf16.msra.mxu0 0
    %2131 = vmatprep.subr.bf16.mxu0 0
    %2132 = vmatpush1.bf16.msra.mxu0 0
    %2133 = vmatprep.subr.bf16.mxu0 0
    %2134 = vmatpush1.bf16.msra.mxu0 0
    %2135 = vmatprep.subr.bf16.mxu0 0
    %2136 = vmatpush1.bf16.msra.mxu0 0
    %2137 = vmatprep.subr.bf16.mxu0 %v449
    %2138 = vmatpush1.bf16.msra.mxu0 %v448
    %2139 = vmatprep.subr.bf16.mxu0 0
    %2140 = vmatpush2.bf16.msra.mxu0 0
    %2141 = vmatprep.subr.bf16.mxu0 0
    %2142 = vmatpush2.bf16.msra.mxu0 0
    %2143 = vmatprep.subr.bf16.mxu0 0
    %2144 = vmatpush2.bf16.msra.mxu0 0
    %2145 = vmatprep.subr.bf16.mxu0 0
    %2146 = vmatpush2.bf16.msra.mxu0 0
    %2147 = vmatprep.subr.bf16.mxu0 0
    %2148 = vmatpush2.bf16.msra.mxu0 0
    %2149 = vmatprep.subr.bf16.mxu0 0
    %2150 = vmatpush2.bf16.msra.mxu0 0
    %2151 = vmatprep.subr.bf16.mxu0 0
    %2152 = vmatpush2.bf16.msra.mxu0 0
    %2153 = vmatprep.subr.bf16.mxu0 0
    %2154 = vmatpush2.bf16.msra.mxu0 0
    %2155 = vmatprep.mubr.bf16.mxu0 0
    %2156 = vmatmul.mubr.bf16.gmra.mxu0 %v2035
    %v2157 = vpop.f32.mrf.mxu0
    %v2158 = vadd.f32 0.0, %v2157
    %v2159 = vpop.f32.mrf.mxu0
    %v2160 = vadd.f32 0.0, %v2159
    %v2161 = vpop.f32.mrf.mxu0
    %v2162 = vpop.f32.mrf.mxu0
    %2163 = vdwg.mxu0
    %2164 = vmatprep.subr.bf16.mxu0 0
    %2165 = vmatpush1.bf16.msra.mxu0 0
    %2166 = vmatprep.subr.bf16.mxu0 0
    %2167 = vmatpush1.bf16.msra.mxu0 0
    %2168 = vmatprep.subr.bf16.mxu0 0
    %2169 = vmatpush1.bf16.msra.mxu0 0
    %2170 = vmatprep.subr.bf16.mxu0 0
    %2171 = vmatpush1.bf16.msra.mxu0 0
    %2172 = vmatprep.subr.bf16.mxu0 0
    %2173 = vmatpush1.bf16.msra.mxu0 0
    %2174 = vmatprep.subr.bf16.mxu0 0
    %2175 = vmatpush1.bf16.msra.mxu0 0
    %2176 = vmatprep.subr.bf16.mxu0 0
    %2177 = vmatpush1.bf16.msra.mxu0 0
    %2178 = vmatprep.subr.bf16.mxu0 %v451
    %2179 = vmatpush1.bf16.msra.mxu0 %v450
    %2180 = vmatprep.subr.bf16.mxu0 0
    %2181 = vmatpush2.bf16.msra.mxu0 0
    %2182 = vmatprep.subr.bf16.mxu0 0
    %2183 = vmatpush2.bf16.msra.mxu0 0
    %2184 = vmatprep.subr.bf16.mxu0 0
    %2185 = vmatpush2.bf16.msra.mxu0 0
    %2186 = vmatprep.subr.bf16.mxu0 0
    %2187 = vmatpush2.bf16.msra.mxu0 0
    %2188 = vmatprep.subr.bf16.mxu0 0
    %2189 = vmatpush2.bf16.msra.mxu0 0
    %2190 = vmatprep.subr.bf16.mxu0 0
    %2191 = vmatpush2.bf16.msra.mxu0 0
    %2192 = vmatprep.subr.bf16.mxu0 0
    %2193 = vmatpush2.bf16.msra.mxu0 0
    %2194 = vmatprep.subr.bf16.mxu0 0
    %2195 = vmatpush2.bf16.msra.mxu0 0
    %2196 = vmatprep.mubr.bf16.mxu0 0
    %2197 = vmatmul.mubr.bf16.gmra.mxu0 %v2035
    %v2198 = vpop.f32.mrf.mxu0
    %v2199 = vadd.f32 0.0, %v2198
    %v2200 = vpop.f32.mrf.mxu0
    %v2201 = vadd.f32 0.0, %v2200
    %v2202 = vpop.f32.mrf.mxu0
    %v2203 = vpop.f32.mrf.mxu0
    %2204 = vdwg.mxu0
    %v2206 = vrot.slane %v2158, 2
    %v2208 = vadd.f32 %v397, %v2206
    %v2209 = vxor.u32 %v2208, 2147483648
    %v2210 = vmul.f32 %v2209, 1.442695
    %v2211 = vpow.pop %v2210
    %v2212 = vadd.f32 %v2211, 1.0
    %v2213 = vrcp.pop %v2212
    %v2214 = vmul.f32 1.0, %v2213
    %v2216 = vrot.slane %v2160, 2
    %2217 = vrot.lane.b32.xlu0 %v2216, 16
    %v2218 = vpop.permute.xlu0 %2217
    %v2220 = vadd.f32 %v397, %v2218
    %v2221 = vxor.u32 %v2220, 2147483648
    %v2222 = vmul.f32 %v2221, 1.442695
    %v2223 = vpow.pop %v2222
    %v2224 = vadd.f32 %v2223, 1.0
    %v2225 = vrcp.pop %v2224
    %v2226 = vmul.f32 1.0, %v2225
    %v2228 = vrot.slane %v2199, 2
    %2229 = vrot.lane.b32.xlu0 %v2228, 32
    %v2230 = vpop.permute.xlu0 %2229
    %v2232 = vadd.f32 %v397, %v2230
    %v2233 = vtanh.pop %v2232
    %v2235 = vrot.slane %v2201, 2
    %2236 = vrot.lane.b32.xlu0 %v2235, 48
    %v2237 = vpop.permute.xlu0 %2236
    %v2239 = vadd.f32 %v397, %v2237
    %v2240 = vxor.u32 %v2239, 2147483648
    %v2241 = vmul.f32 %v2240, 1.442695
    %v2242 = vpow.pop %v2241
    %v2243 = vadd.f32 %v2242, 1.0
    %v2244 = vrcp.pop %v2243
    %v2245 = vmul.f32 1.0, %v2244
    %v2247 = vrot.slane %v1997, 6
    %v2249 = vmul.f32 %v2226, %v2247
    %2251 = vrot.lane.b32.xlu0 %v2233, 96
    %v2252 = vpop.permute.xlu0 %2251
    %v2254 = vmul.f32 %v2214, %v2252
    %2256 = vrot.lane.b32.xlu0 %v2254, 16
    %v2257 = vpop.permute.xlu0 %2256
    %v2259 = vadd.f32 %v2249, %v2257
    %v2260 = vtanh.pop %v2259
    %2262 = vrot.lane.b32.xlu0 %v2260, 32
    %v2263 = vpop.permute.xlu0 %2262
    %v2265 = vmul.f32 %v2245, %v2263
    %v2266 = vpack.c.bf16 %v2265, %v2265
    %s2267 = scalar_lea.vmem %s4, 224
    %v2268 = vld [vmem:[%s2267] sm:$0xff]
    %v2269 = vld [vmem:[%s2267 + $0x8] sm:$0xff]
    %v2270 = vld [vmem:[%s2267 + $0x10] sm:$0xff]
    %v2271 = vld [vmem:[%s2267 + $0x18] sm:$0xff]
    %v2273 = vrot.slane %v2266, 3
    %2274 = vrot.lane.b32.xlu0 %v2273, 80
    %v2275 = vpop.permute.xlu0 %2274
    %v2280 = vunpack.c.l.b16 %v2268
    %v2281 = vunpack.c.h.b16 %v2268
    %v2282 = vunpack.c.l.b16 %v2269
    %v2283 = vunpack.c.h.b16 %v2269
    %v2284 = vunpack.c.l.b16 %v2270
    %v2285 = vunpack.c.h.b16 %v2270
    %v2286 = vunpack.c.l.b16 %v2271
    %v2287 = vunpack.c.h.b16 %v2271
    %v2288 = vpack.c.b16 %v2284, %v2280
    %v2289 = vpack.c.b16 %v2285, %v2281
    %v2290 = vpack.c.b16 %v2286, %v2282
    %v2291 = vpack.c.b16 %v2287, %v2283
    %v2297 = vsel %vm456, %v2275, 0
    %2299 = vmatprep.subr.bf16.mxu0 0
    %2300 = vmatpush1.bf16.msra.mxu0 0
    %2301 = vmatprep.subr.bf16.mxu0 0
    %2302 = vmatpush1.bf16.msra.mxu0 0
    %2303 = vmatprep.subr.bf16.mxu0 0
    %2304 = vmatpush1.bf16.msra.mxu0 0
    %2305 = vmatprep.subr.bf16.mxu0 0
    %2306 = vmatpush1.bf16.msra.mxu0 0
    %2307 = vmatprep.subr.bf16.mxu0 0
    %2308 = vmatpush1.bf16.msra.mxu0 0
    %2309 = vmatprep.subr.bf16.mxu0 0
    %2310 = vmatpush1.bf16.msra.mxu0 0
    %2311 = vmatprep.subr.bf16.mxu0 0
    %2312 = vmatpush1.bf16.msra.mxu0 0
    %2313 = vmatprep.subr.bf16.mxu0 %v2289
    %2314 = vmatpush1.bf16.msra.mxu0 %v2288
    %2315 = vmatprep.subr.bf16.mxu0 0
    %2316 = vmatpush2.bf16.msra.mxu0 0
    %2317 = vmatprep.subr.bf16.mxu0 0
    %2318 = vmatpush2.bf16.msra.mxu0 0
    %2319 = vmatprep.subr.bf16.mxu0 0
    %2320 = vmatpush2.bf16.msra.mxu0 0
    %2321 = vmatprep.subr.bf16.mxu0 0
    %2322 = vmatpush2.bf16.msra.mxu0 0
    %2323 = vmatprep.subr.bf16.mxu0 0
    %2324 = vmatpush2.bf16.msra.mxu0 0
    %2325 = vmatprep.subr.bf16.mxu0 0
    %2326 = vmatpush2.bf16.msra.mxu0 0
    %2327 = vmatprep.subr.bf16.mxu0 0
    %2328 = vmatpush2.bf16.msra.mxu0 0
    %2329 = vmatprep.subr.bf16.mxu0 0
    %2330 = vmatpush2.bf16.msra.mxu0 0
    %2331 = vmatprep.mubr.bf16.mxu0 0
    %2332 = vmatmul.mubr.bf16.gmra.mxu0 %v2297
    %v2333 = vpop.f32.mrf.mxu0
    %v2334 = vadd.f32 0.0, %v2333
    %v2335 = vpop.f32.mrf.mxu0
    %v2336 = vadd.f32 0.0, %v2335
    %v2337 = vpop.f32.mrf.mxu0
    %v2338 = vpop.f32.mrf.mxu0
    %2339 = vdwg.mxu0
    %2340 = vmatprep.subr.bf16.mxu0 0
    %2341 = vmatpush1.bf16.msra.mxu0 0
    %2342 = vmatprep.subr.bf16.mxu0 0
    %2343 = vmatpush1.bf16.msra.mxu0 0
    %2344 = vmatprep.subr.bf16.mxu0 0
    %2345 = vmatpush1.bf16.msra.mxu0 0
    %2346 = vmatprep.subr.bf16.mxu0 0
    %2347 = vmatpush1.bf16.msra.mxu0 0
    %2348 = vmatprep.subr.bf16.mxu0 0
    %2349 = vmatpush1.bf16.msra.mxu0 0
    %2350 = vmatprep.subr.bf16.mxu0 0
    %2351 = vmatpush1.bf16.msra.mxu0 0
    %2352 = vmatprep.subr.bf16.mxu0 0
    %2353 = vmatpush1.bf16.msra.mxu0 0
    %2354 = vmatprep.subr.bf16.mxu0 %v2291
    %2355 = vmatpush1.bf16.msra.mxu0 %v2290
    %2356 = vmatprep.subr.bf16.mxu0 0
    %2357 = vmatpush2.bf16.msra.mxu0 0
    %2358 = vmatprep.subr.bf16.mxu0 0
    %2359 = vmatpush2.bf16.msra.mxu0 0
    %2360 = vmatprep.subr.bf16.mxu0 0
    %2361 = vmatpush2.bf16.msra.mxu0 0
    %2362 = vmatprep.subr.bf16.mxu0 0
    %2363 = vmatpush2.bf16.msra.mxu0 0
    %2364 = vmatprep.subr.bf16.mxu0 0
    %2365 = vmatpush2.bf16.msra.mxu0 0
    %2366 = vmatprep.subr.bf16.mxu0 0
    %2367 = vmatpush2.bf16.msra.mxu0 0
    %2368 = vmatprep.subr.bf16.mxu0 0
    %2369 = vmatpush2.bf16.msra.mxu0 0
    %2370 = vmatprep.subr.bf16.mxu0 0
    %2371 = vmatpush2.bf16.msra.mxu0 0
    %2372 = vmatprep.mubr.bf16.mxu0 0
    %2373 = vmatmul.mubr.bf16.gmra.mxu0 %v2297
    %v2374 = vpop.f32.mrf.mxu0
    %v2375 = vadd.f32 0.0, %v2374
    %v2376 = vpop.f32.mrf.mxu0
    %v2377 = vadd.f32 0.0, %v2376
    %v2378 = vpop.f32.mrf.mxu0
    %v2379 = vpop.f32.mrf.mxu0
    %2380 = vdwg.mxu0
    %v2381 = vadd.f32 %v2119, %v2334
    %v2382 = vadd.f32 %v2120, %v2336
    %v2383 = vadd.f32 %v2121, %v2375
    %v2384 = vadd.f32 %v2122, %v2377
    %v2385 = vld [vmem:[%s5] sm:$0xf]
    %v2387 = vlaneseq
    %v2388 = vshrl.u32 %v2387, 7
    %v2389 = vsub.s32 0, %v2388
    %v2390 = vrot.slane %v2385, %v2389
    %v2391 = vlaneseq
    %v2392 = vshrl.u32 %v2391, 7
    %v2393 = vsub.s32 1, %v2392
    %v2394 = vrot.slane %v2385, %v2393
    %v2395 = vlaneseq
    %v2396 = vshrl.u32 %v2395, 7
    %v2397 = vsub.s32 2, %v2396
    %v2398 = vrot.slane %v2385, %v2397
    %v2399 = vlaneseq
    %v2400 = vshrl.u32 %v2399, 7
    %v2401 = vsub.s32 3, %v2400
    %v2402 = vrot.slane %v2385, %v2401
    %v2407 = vadd.f32 %v2381, %v2390
    %v2408 = vadd.f32 %v2382, %v2394
    %v2409 = vadd.f32 %v2383, %v2398
    %v2410 = vadd.f32 %v2384, %v2402
    %v2411 = vmax.f32 %v2407, 0.0
    %v2412 = vmax.f32 %v2408, 0.0
    %v2413 = vmax.f32 %v2409, 0.0
    %v2414 = vmax.f32 %v2410, 0.0
    %v2415 = vpack.c.bf16 %v2411, %v2411
    %v2416 = vpack.c.bf16 %v2412, %v2412
    %v2417 = vpack.c.bf16 %v2413, %v2413
    %v2418 = vpack.c.bf16 %v2414, %v2414
    %v2419 = vld [vmem:[%s6] sm:$0xf]
    %v2420 = vld [vmem:[%s6 + $0x4] sm:$0xf]
    %v2421 = vld [vmem:[%s6 + $0x8] sm:$0xf]
    %v2422 = vld [vmem:[%s6 + $0xc] sm:$0xf]
    %v2423 = vld [vmem:[%s6 + $0x10] sm:$0xf]
    %v2424 = vld [vmem:[%s6 + $0x14] sm:$0xf]
    %v2425 = vld [vmem:[%s6 + $0x18] sm:$0xf]
    %v2426 = vld [vmem:[%s6 + $0x1c] sm:$0xf]
    %v2427 = vld [vmem:[%s6 + $0x20] sm:$0xf]
    %v2428 = vld [vmem:[%s6 + $0x24] sm:$0xf]
    %v2429 = vld [vmem:[%s6 + $0x28] sm:$0xf]
    %v2430 = vld [vmem:[%s6 + $0x2c] sm:$0xf]
    %v2431 = vld [vmem:[%s6 + $0x30] sm:$0xf]
    %v2432 = vld [vmem:[%s6 + $0x34] sm:$0xf]
    %v2433 = vld [vmem:[%s6 + $0x38] sm:$0xf]
    %v2434 = vld [vmem:[%s6 + $0x3c] sm:$0xf]
    %v2435 = vld [vmem:[%s6 + $0x40] sm:$0xf]
    %v2436 = vld [vmem:[%s6 + $0x44] sm:$0xf]
    %v2437 = vld [vmem:[%s6 + $0x48] sm:$0xf]
    %v2438 = vld [vmem:[%s6 + $0x4c] sm:$0xf]
    %v2439 = vld [vmem:[%s6 + $0x50] sm:$0xf]
    %v2440 = vld [vmem:[%s6 + $0x54] sm:$0xf]
    %v2441 = vld [vmem:[%s6 + $0x58] sm:$0xf]
    %v2442 = vld [vmem:[%s6 + $0x5c] sm:$0xf]
    %v2443 = vld [vmem:[%s6 + $0x60] sm:$0xf]
    %v2444 = vld [vmem:[%s6 + $0x64] sm:$0xf]
    %v2445 = vld [vmem:[%s6 + $0x68] sm:$0xf]
    %v2446 = vld [vmem:[%s6 + $0x6c] sm:$0xf]
    %v2447 = vld [vmem:[%s6 + $0x70] sm:$0xf]
    %v2448 = vld [vmem:[%s6 + $0x74] sm:$0xf]
    %v2449 = vld [vmem:[%s6 + $0x78] sm:$0xf]
    %v2450 = vld [vmem:[%s6 + $0x7c] sm:$0xf]
    %v2451 = vld [vmem:[%s6 + $0x80] sm:$0xf]
    %v2452 = vld [vmem:[%s6 + $0x84] sm:$0xf]
    %v2453 = vld [vmem:[%s6 + $0x88] sm:$0xf]
    %v2454 = vld [vmem:[%s6 + $0x8c] sm:$0xf]
    %v2455 = vld [vmem:[%s6 + $0x90] sm:$0xf]
    %v2456 = vld [vmem:[%s6 + $0x94] sm:$0xf]
    %v2457 = vld [vmem:[%s6 + $0x98] sm:$0xf]
    %v2458 = vld [vmem:[%s6 + $0x9c] sm:$0xf]
    %v2459 = vld [vmem:[%s6 + $0xa0] sm:$0xf]
    %v2460 = vld [vmem:[%s6 + $0xa4] sm:$0xf]
    %v2461 = vld [vmem:[%s6 + $0xa8] sm:$0xf]
    %v2462 = vld [vmem:[%s6 + $0xac] sm:$0xf]
    %v2463 = vld [vmem:[%s6 + $0xb0] sm:$0xf]
    %v2464 = vld [vmem:[%s6 + $0xb4] sm:$0xf]
    %v2465 = vld [vmem:[%s6 + $0xb8] sm:$0xf]
    %v2466 = vld [vmem:[%s6 + $0xbc] sm:$0xf]
    %v2467 = vld [vmem:[%s6 + $0xc0] sm:$0xf]
    %v2468 = vld [vmem:[%s6 + $0xc4] sm:$0xf]
    %v2469 = vld [vmem:[%s6 + $0xc8] sm:$0xf]
    %v2470 = vld [vmem:[%s6 + $0xcc] sm:$0xf]
    %v2471 = vld [vmem:[%s6 + $0xd0] sm:$0xf]
    %v2472 = vld [vmem:[%s6 + $0xd4] sm:$0xf]
    %v2473 = vld [vmem:[%s6 + $0xd8] sm:$0xf]
    %v2474 = vld [vmem:[%s6 + $0xdc] sm:$0xf]
    %v2475 = vld [vmem:[%s6 + $0xe0] sm:$0xf]
    %v2476 = vld [vmem:[%s6 + $0xe4] sm:$0xf]
    %v2477 = vld [vmem:[%s6 + $0xe8] sm:$0xf]
    %v2478 = vld [vmem:[%s6 + $0xec] sm:$0xf]
    %v2479 = vld [vmem:[%s6 + $0xf0] sm:$0xf]
    %v2480 = vld [vmem:[%s6 + $0xf4] sm:$0xf]
    %v2481 = vld [vmem:[%s6 + $0xf8] sm:$0xf]
    %v2482 = vld [vmem:[%s6 + $0xfc] sm:$0xf]
    %v2483 = vld [vmem:[%s7] sm:$0x1]
    %v2485 = vlaneseq
    %v2486 = vshrl.u32 %v2485, 7
    %v2487 = vsub.s32 0, %v2486
    %v2488 = vrot.slane %v2483, %v2487
    %v2554 = vunpack.c.l.b16 %v2419
    %v2555 = vunpack.c.l.b16 %v2420
    %v2556 = vunpack.c.l.b16 %v2421
    %v2557 = vunpack.c.l.b16 %v2422
    %v2558 = vunpack.c.l.b16 %v2423
    %v2559 = vunpack.c.l.b16 %v2424
    %v2560 = vunpack.c.l.b16 %v2425
    %v2561 = vunpack.c.l.b16 %v2426
    %v2562 = vunpack.c.l.b16 %v2427
    %v2563 = vunpack.c.l.b16 %v2428
    %v2564 = vunpack.c.l.b16 %v2429
    %v2565 = vunpack.c.l.b16 %v2430
    %v2566 = vunpack.c.l.b16 %v2431
    %v2567 = vunpack.c.l.b16 %v2432
    %v2568 = vunpack.c.l.b16 %v2433
    %v2569 = vunpack.c.l.b16 %v2434
    %v2570 = vunpack.c.l.b16 %v2435
    %v2571 = vunpack.c.l.b16 %v2436
    %v2572 = vunpack.c.l.b16 %v2437
    %v2573 = vunpack.c.l.b16 %v2438
    %v2574 = vunpack.c.l.b16 %v2439
    %v2575 = vunpack.c.l.b16 %v2440
    %v2576 = vunpack.c.l.b16 %v2441
    %v2577 = vunpack.c.l.b16 %v2442
    %v2578 = vunpack.c.l.b16 %v2443
    %v2579 = vunpack.c.l.b16 %v2444
    %v2580 = vunpack.c.l.b16 %v2445
    %v2581 = vunpack.c.l.b16 %v2446
    %v2582 = vunpack.c.l.b16 %v2447
    %v2583 = vunpack.c.l.b16 %v2448
    %v2584 = vunpack.c.l.b16 %v2449
    %v2585 = vunpack.c.l.b16 %v2450
    %v2586 = vunpack.c.l.b16 %v2451
    %v2587 = vunpack.c.l.b16 %v2452
    %v2588 = vunpack.c.l.b16 %v2453
    %v2589 = vunpack.c.l.b16 %v2454
    %v2590 = vunpack.c.l.b16 %v2455
    %v2591 = vunpack.c.l.b16 %v2456
    %v2592 = vunpack.c.l.b16 %v2457
    %v2593 = vunpack.c.l.b16 %v2458
    %v2594 = vunpack.c.l.b16 %v2459
    %v2595 = vunpack.c.l.b16 %v2460
    %v2596 = vunpack.c.l.b16 %v2461
    %v2597 = vunpack.c.l.b16 %v2462
    %v2598 = vunpack.c.l.b16 %v2463
    %v2599 = vunpack.c.l.b16 %v2464
    %v2600 = vunpack.c.l.b16 %v2465
    %v2601 = vunpack.c.l.b16 %v2466
    %v2602 = vunpack.c.l.b16 %v2467
    %v2603 = vunpack.c.l.b16 %v2468
    %v2604 = vunpack.c.l.b16 %v2469
    %v2605 = vunpack.c.l.b16 %v2470
    %v2606 = vunpack.c.l.b16 %v2471
    %v2607 = vunpack.c.l.b16 %v2472
    %v2608 = vunpack.c.l.b16 %v2473
    %v2609 = vunpack.c.l.b16 %v2474
    %v2610 = vunpack.c.l.b16 %v2475
    %v2611 = vunpack.c.l.b16 %v2476
    %v2612 = vunpack.c.l.b16 %v2477
    %v2613 = vunpack.c.l.b16 %v2478
    %v2614 = vunpack.c.l.b16 %v2479
    %v2615 = vunpack.c.l.b16 %v2480
    %v2616 = vunpack.c.l.b16 %v2481
    %v2617 = vunpack.c.l.b16 %v2482
    %v2618 = vpack.c.b16 %v2555, %v2554
    %v2619 = vpack.c.b16 %v2557, %v2556
    %v2620 = vpack.c.b16 %v2559, %v2558
    %v2621 = vpack.c.b16 %v2561, %v2560
    %v2622 = vpack.c.b16 %v2563, %v2562
    %v2623 = vpack.c.b16 %v2565, %v2564
    %v2624 = vpack.c.b16 %v2567, %v2566
    %v2625 = vpack.c.b16 %v2569, %v2568
    %v2626 = vpack.c.b16 %v2571, %v2570
    %v2627 = vpack.c.b16 %v2573, %v2572
    %v2628 = vpack.c.b16 %v2575, %v2574
    %v2629 = vpack.c.b16 %v2577, %v2576
    %v2630 = vpack.c.b16 %v2579, %v2578
    %v2631 = vpack.c.b16 %v2581, %v2580
    %v2632 = vpack.c.b16 %v2583, %v2582
    %v2633 = vpack.c.b16 %v2585, %v2584
    %v2634 = vpack.c.b16 %v2587, %v2586
    %v2635 = vpack.c.b16 %v2589, %v2588
    %v2636 = vpack.c.b16 %v2591, %v2590
    %v2637 = vpack.c.b16 %v2593, %v2592
    %v2638 = vpack.c.b16 %v2595, %v2594
    %v2639 = vpack.c.b16 %v2597, %v2596
    %v2640 = vpack.c.b16 %v2599, %v2598
    %v2641 = vpack.c.b16 %v2601, %v2600
    %v2642 = vpack.c.b16 %v2603, %v2602
    %v2643 = vpack.c.b16 %v2605, %v2604
    %v2644 = vpack.c.b16 %v2607, %v2606
    %v2645 = vpack.c.b16 %v2609, %v2608
    %v2646 = vpack.c.b16 %v2611, %v2610
    %v2647 = vpack.c.b16 %v2613, %v2612
    %v2648 = vpack.c.b16 %v2615, %v2614
    %v2649 = vpack.c.b16 %v2617, %v2616
    %2682 = vmatprep.subr.bf16.mxu0 0
    %2683 = vmatpush1.bf16.msra.mxu0 %v2625
    %2684 = vmatprep.subr.bf16.mxu0 0
    %2685 = vmatpush1.bf16.msra.mxu0 %v2624
    %2686 = vmatprep.subr.bf16.mxu0 0
    %2687 = vmatpush1.bf16.msra.mxu0 %v2623
    %2688 = vmatprep.subr.bf16.mxu0 0
    %2689 = vmatpush1.bf16.msra.mxu0 %v2622
    %2690 = vmatprep.subr.bf16.mxu0 0
    %2691 = vmatpush1.bf16.msra.mxu0 %v2621
    %2692 = vmatprep.subr.bf16.mxu0 0
    %2693 = vmatpush1.bf16.msra.mxu0 %v2620
    %2694 = vmatprep.subr.bf16.mxu0 0
    %2695 = vmatpush1.bf16.msra.mxu0 %v2619
    %2696 = vmatprep.subr.bf16.mxu0 0
    %2697 = vmatpush1.bf16.msra.mxu0 %v2618
    %2698 = vmatprep.subr.bf16.mxu0 0
    %2699 = vmatpush2.bf16.msra.mxu0 %v2633
    %2700 = vmatprep.subr.bf16.mxu0 0
    %2701 = vmatpush2.bf16.msra.mxu0 %v2632
    %2702 = vmatprep.subr.bf16.mxu0 0
    %2703 = vmatpush2.bf16.msra.mxu0 %v2631
    %2704 = vmatprep.subr.bf16.mxu0 0
    %2705 = vmatpush2.bf16.msra.mxu0 %v2630
    %2706 = vmatprep.subr.bf16.mxu0 0
    %2707 = vmatpush2.bf16.msra.mxu0 %v2629
    %2708 = vmatprep.subr.bf16.mxu0 0
    %2709 = vmatpush2.bf16.msra.mxu0 %v2628
    %2710 = vmatprep.subr.bf16.mxu0 0
    %2711 = vmatpush2.bf16.msra.mxu0 %v2627
    %2712 = vmatprep.subr.bf16.mxu0 0
    %2713 = vmatpush2.bf16.msra.mxu0 %v2626
    %2714 = vmatprep.mubr.bf16.mxu0 %v2416
    %2715 = vmatmul.mubr.bf16.gmra.mxu0 %v2415
    %v2716 = vpop.f32.mrf.mxu0
    %v2717 = vadd.f32 %v2488, %v2716
    %v2718 = vpop.f32.mrf.mxu0
    %v2719 = vpop.f32.mrf.mxu0
    %v2720 = vpop.f32.mrf.mxu0
    %2721 = vdwg.mxu0
    %2722 = vmatprep.subr.bf16.mxu0 0
    %2723 = vmatpush1.bf16.msra.mxu0 %v2641
    %2724 = vmatprep.subr.bf16.mxu0 0
    %2725 = vmatpush1.bf16.msra.mxu0 %v2640
    %2726 = vmatprep.subr.bf16.mxu0 0
    %2727 = vmatpush1.bf16.msra.mxu0 %v2639
    %2728 = vmatprep.subr.bf16.mxu0 0
    %2729 = vmatpush1.bf16.msra.mxu0 %v2638
    %2730 = vmatprep.subr.bf16.mxu0 0
    %2731 = vmatpush1.bf16.msra.mxu0 %v2637
    %2732 = vmatprep.subr.bf16.mxu0 0
    %2733 = vmatpush1.bf16.msra.mxu0 %v2636
    %2734 = vmatprep.subr.bf16.mxu0 0
    %2735 = vmatpush1.bf16.msra.mxu0 %v2635
    %2736 = vmatprep.subr.bf16.mxu0 0
    %2737 = vmatpush1.bf16.msra.mxu0 %v2634
    %2738 = vmatprep.subr.bf16.mxu0 0
    %2739 = vmatpush2.bf16.msra.mxu0 %v2649
    %2740 = vmatprep.subr.bf16.mxu0 0
    %2741 = vmatpush2.bf16.msra.mxu0 %v2648
    %2742 = vmatprep.subr.bf16.mxu0 0
    %2743 = vmatpush2.bf16.msra.mxu0 %v2647
    %2744 = vmatprep.subr.bf16.mxu0 0
    %2745 = vmatpush2.bf16.msra.mxu0 %v2646
    %2746 = vmatprep.subr.bf16.mxu0 0
    %2747 = vmatpush2.bf16.msra.mxu0 %v2645
    %2748 = vmatprep.subr.bf16.mxu0 0
    %2749 = vmatpush2.bf16.msra.mxu0 %v2644
    %2750 = vmatprep.subr.bf16.mxu0 0
    %2751 = vmatpush2.bf16.msra.mxu0 %v2643
    %2752 = vmatprep.subr.bf16.mxu0 0
    %2753 = vmatpush2.bf16.msra.mxu0 %v2642
    %2754 = vmatprep.mubr.bf16.mxu0 %v2418
    %2755 = vmatmul.mubr.bf16.gmra.mxu0 %v2417
    %v2756 = vpop.f32.mrf.mxu0
    %v2757 = vadd.f32 %v2717, %v2756
    %v2758 = vpop.f32.mrf.mxu0
    %v2759 = vpop.f32.mrf.mxu0
    %v2760 = vpop.f32.mrf.mxu0
    %2761 = vdwg.mxu0
    %vm2762 = vcmask 58368
    %2763 = vst.msk [vmem:[#allocation2] sm:$0x3] %vm2762, %v2757
    // Predicated region
    $region34: #{tpu_custom_call.1} parent=1 // pred_check
      _
    $region35: #{tpu_custom_call.1} parent=1 // pred_check_branch
      %2765 = sbr.rel (0) target = $region37
    $region36: #{tpu_custom_call.1} parent=1 // pred_region
      %s2767 = ssub.s32 32, 32
      %2768 = vsyncadd [#allocation3], %s2767
      %s2770 = sshll.u32 [#allocation2], 4
      %s2771 = int_to_ptr.vmem [resolvable:$true] %s2770
      %2773 = dma.vmem_to_hbm [thread:$0]  %s2771, 32, %s8, [#allocation3]
    $region37: #{tpu_custom_call.1} parent=1 // pred_fallthru
      _
    // Predicated region
    $region38: #{tpu_custom_call.1} parent=1 // pred_check
      _
    $region39: #{tpu_custom_call.1} parent=1 // pred_check_branch
      %2775 = sbr.rel (0) target = $region41
    $region40: #{tpu_custom_call.1} parent=1 // pred_region
      %2776 = dma.done [#allocation3], 32
    $region41: #{tpu_custom_call.1} parent=1 // pred_fallthru
      _
    %2777 = vsyncpa [#allocation3], 1

</llo_original>
